<compile_context>
chip_gen: v7x
topology: tpu7x:2x2x1
jax: 0.10.0
libtpu: 0.0.40
codegen_flags: <defaults>
</compile_context>

<pallas_src>
import functools

import jax
import jax.numpy as jnp
import numpy as np
from jax import lax
from jax.experimental import pallas as pl
from jax.experimental.pallas import tpu as pltpu

BN_EPS = 1e-5


# --------------------------------------------------------------------------- #
# Wrapper-side helpers (plain JAX glue, tiny).
# --------------------------------------------------------------------------- #
def _band_weights(w, W):
    """(Cout, Cin, 3, 3) torch conv weight -> (3, W*Cin, W*Cout) banded mats.

    band[ky][wi*Cin + ci, wo*Cout + co] = w[co, ci, ky, kx] with kx = wi-wo+1,
    zero outside the band, so a single matmul along the folded (W*Cin) axis
    performs all kx taps AND the W-boundary zero padding.
    """
    wk = jnp.transpose(w, (2, 3, 1, 0)).astype(jnp.float32)   # (ky, kx, Cin, Cout)
    bands = []
    for ky in range(3):
        m = 0.0
        for kx in range(3):
            m = m + jnp.kron(jnp.eye(W, k=1 - kx, dtype=jnp.float32), wk[ky, kx])
        bands.append(m)
    return jnp.stack(bands, axis=0)                           # (3, W*Cin, W*Cout)


def _pick_block_n(N, H, max_rows=128):
    """Images per grid step: bound rows (vreg pressure) and keep >=2 grid steps
    when possible (pipelining + v7x megacore sharding)."""
    cap = max(1, min(max(1, N // 2), max_rows // max(H, 1)))
    cap = min(cap, N)
    for c in range(cap, 0, -1):
        if N % c == 0:
            return c
    return 1


def _row_in_image(tn, H, wco):
    """int32 (tn*H, wco) holding the row index within each image."""
    if tn == 1:
        return lax.broadcasted_iota(jnp.int32, (H, wco), 0)
    return lax.broadcasted_iota(jnp.int32, (tn, H, wco), 1).reshape(tn * H, wco)


def _conv3_rows(x, w_ref, row, H):
    """3x3 conv via 3 banded matmuls; ky taps realized with sublane rolls.

    x:     (M, W*Cin) bf16 activations (M = tn*H rows, image-major).
    w_ref: (3, W*Cin, W*Cout) banded weights ref (bf16).
    row:   (M, W*Cout) int32 row-within-image index (for edge masking).
    """
    M = x.shape[0]
    # ky = 1 (center row tap)
    acc = jnp.dot(x, w_ref[1], preferred_element_type=jnp.float32)
    # ky = 0 tap uses input row y-1: roll result down one sublane, mask row 0.
    p0 = jnp.dot(x, w_ref[0], preferred_element_type=jnp.float32)
    acc = acc + jnp.where(row == 0, 0.0, pltpu.roll(p0, shift=1, axis=0))
    # ky = 2 tap uses input row y+1: roll result up one sublane (circular roll
    # by M-1 == roll by -1; pltpu.roll requires a non-negative shift), mask the
    # last row of each image so the wrapped row never contributes.
    p2 = jnp.dot(x, w_ref[2], preferred_element_type=jnp.float32)
    acc = acc + jnp.where(row == H - 1, 0.0, pltpu.roll(p2, shift=M - 1, axis=0))
    return acc


# --------------------------------------------------------------------------- #
# Kernel 1: conv1 (3x3, pad 1) + tanh + per-block BN partial sums.
# --------------------------------------------------------------------------- #
def _conv1_stats_kernel(x_ref, w1_ref, b1_ref, h_ref, s_ref, ss_ref, *, H):
    tn, _, wci = x_ref.shape
    wco = h_ref.shape[2]
    M = tn * H

    x = x_ref[...].reshape(M, wci).astype(w1_ref.dtype)        # f32 -> bf16 for MXU
    row = _row_in_image(tn, H, wco)
    acc = _conv3_rows(x, w1_ref, row, H)

    h = jnp.tanh(acc + b1_ref[...])                            # f32 (M, W*Cout)

    h_ref[...] = h.reshape(h_ref.shape).astype(h_ref.dtype)
    # Partial sums for the global two-pass BatchNorm statistics.
    s_ref[...] = jnp.sum(h, axis=0).reshape(s_ref.shape)
    ss_ref[...] = jnp.sum(h * h, axis=0).reshape(ss_ref.shape)


# --------------------------------------------------------------------------- #
# Kernel 2: BN affine (globally reduced scale/shift) + conv2 + tanh + shortcut.
# --------------------------------------------------------------------------- #
def _bn_conv2_shortcut_kernel(*refs, H, identity):
    if identity:
        h_ref, x_ref, scale_ref, shift_ref, w2_ref, b2_ref, o_ref = refs
        ws_ref = bs_ref = None
    else:
        (h_ref, x_ref, scale_ref, shift_ref, w2_ref, b2_ref,
         ws_ref, bs_ref, o_ref) = refs

    tn, _, wco = h_ref.shape
    wci = x_ref.shape[2]
    M = tn * H

    # BatchNorm: gamma*rsqrt(var+eps) and beta-mean*scale pre-folded per channel.
    hn = (h_ref[...].reshape(M, wco).astype(jnp.float32) * scale_ref[...]
          + shift_ref[...])
    hb = hn.astype(w2_ref.dtype)                               # bf16 for the MXU

    row = _row_in_image(tn, H, wco)
    acc = _conv3_rows(hb, w2_ref, row, H)

    y = jnp.tanh(acc + b2_ref[...])

    x = x_ref[...].reshape(M, wci)                             # f32 shortcut input
    if identity:
        sc = x
    else:
        sc = jnp.dot(x, ws_ref[...], preferred_element_type=jnp.float32) + bs_ref[...]

    o_ref[...] = (y + sc).reshape(o_ref.shape).astype(o_ref.dtype)


# --------------------------------------------------------------------------- #
# Public wrapper: NCHW in / NCHW out, matching the PyTorch module (train-mode BN).
# --------------------------------------------------------------------------- #
def residual_layer_pallas(x_nchw, params, *, block_n=None,
                          matmul_dtype=jnp.bfloat16):
    """x_nchw: (N, Cin, H, W) float32 -> (N, Cout, H, W) float32."""
    N, Cin, H, W = x_nchw.shape
    Cout = params["w1"].shape[0]
    identity = params["ws"] is None
    wci, wco = W * Cin, W * Cout

    # ---- wrapper glue: folded layout + banded weights ----------------------
    x2d = (jnp.transpose(x_nchw, (0, 2, 3, 1))
           .reshape(N, H, wci).astype(jnp.float32))
    w1b = _band_weights(params["w1"], W).astype(matmul_dtype)   # (3, wci, wco)
    w2b = _band_weights(params["w2"], W).astype(matmul_dtype)   # (3, wco, wco)
    b1r = jnp.tile(params["b1"].astype(jnp.float32), W).reshape(1, wco)
    b2r = jnp.tile(params["b2"].astype(jnp.float32), W).reshape(1, wco)

    tn = _pick_block_n(N, H) if block_n is None else block_n
    grid = (N // tn,)
    cparams = pltpu.CompilerParams(
        dimension_semantics=("parallel",),        # v7x: shard batch over 2 TCs
        vmem_limit_bytes=32 * 1024 * 1024)

    # ---- pass 1: conv1 + tanh + per-block BN partial sums ------------------
    h, psum, psq = pl.pallas_call(
        functools.partial(_conv1_stats_kernel, H=H),
        grid=grid,
        in_specs=[
            pl.BlockSpec((tn, H, wci), lambda i: (i, 0, 0)),
            pl.BlockSpec((3, wci, wco), lambda i: (0, 0, 0)),
            pl.BlockSpec((1, wco), lambda i: (0, 0)),
        ],
        out_specs=(
            pl.BlockSpec((tn, H, wco), lambda i: (i, 0, 0)),
            pl.BlockSpec((1, 1, wco), lambda i: (i, 0, 0)),
            pl.BlockSpec((1, 1, wco), lambda i: (i, 0, 0)),
        ),
        out_shape=(
            jax.ShapeDtypeStruct((N, H, wco), matmul_dtype),
            jax.ShapeDtypeStruct((grid[0], 1, wco), jnp.float32),
            jax.ShapeDtypeStruct((grid[0], 1, wco), jnp.float32),
        ),
        compiler_params=cparams,
    )(x2d, w1b, b1r)

    # ---- tiny global reduction + BN affine fold (O(Cout) work) -------------
    cnt = jnp.float32(N * H * W)
    tot = jnp.sum(psum.reshape(-1, W, Cout), axis=(0, 1))
    tot2 = jnp.sum(psq.reshape(-1, W, Cout), axis=(0, 1))
    mean = tot / cnt
    var = jnp.maximum(tot2 / cnt - mean * mean, 0.0)           # biased variance
    scale = params["gamma"].astype(jnp.float32) * lax.rsqrt(var + BN_EPS)
    shift = params["beta"].astype(jnp.float32) - mean * scale
    scale_r = jnp.tile(scale, W).reshape(1, wco)
    shift_r = jnp.tile(shift, W).reshape(1, wco)

    # ---- pass 2: BN affine + conv2 + tanh + shortcut ------------------------
    ins = [h, x2d, scale_r, shift_r, w2b, b2r]
    in_specs = [
        pl.BlockSpec((tn, H, wco), lambda i: (i, 0, 0)),
        pl.BlockSpec((tn, H, wci), lambda i: (i, 0, 0)),
        pl.BlockSpec((1, wco), lambda i: (0, 0)),
        pl.BlockSpec((1, wco), lambda i: (0, 0)),
        pl.BlockSpec((3, wco, wco), lambda i: (0, 0, 0)),
        pl.BlockSpec((1, wco), lambda i: (0, 0)),
    ]
    if not identity:
        wsb = jnp.kron(
            jnp.eye(W, dtype=jnp.float32),
            jnp.transpose(params["ws"][:, :, 0, 0], (1, 0)).astype(jnp.float32),
        )                                                       # (wci, wco) f32
        bsr = jnp.tile(params["bs"].astype(jnp.float32), W).reshape(1, wco)
        ins += [wsb, bsr]
        in_specs += [pl.BlockSpec((wci, wco), lambda i: (0, 0)),
                     pl.BlockSpec((1, wco), lambda i: (0, 0))]

    out = pl.pallas_call(
        functools.partial(_bn_conv2_shortcut_kernel, H=H, identity=identity),
        grid=grid,
        in_specs=in_specs,
        out_specs=pl.BlockSpec((tn, H, wco), lambda i: (i, 0, 0)),
        out_shape=jax.ShapeDtypeStruct((N, H, wco), jnp.float32),
        compiler_params=cparams,
    )(*ins)

    return jnp.transpose(out.reshape(N, H, W, Cout), (0, 3, 1, 2))


# --------------------------------------------------------------------------- #
# Pure-JAX NCHW reference matching the PyTorch forward (train-mode BN).
# --------------------------------------------------------------------------- #
def residual_layer_reference(x, params):
    dn = ("NCHW", "OIHW", "NCHW")
    w1, b1, gamma, beta, w2, b2, ws, bs = (
        params["w1"], params["b1"], params["gamma"], params["beta"],
        params["w2"], params["b2"], params["ws"], params["bs"])
    h = lax.conv_general_dilated(x, w1, (1, 1), "SAME",
                                 dimension_numbers=dn) + b1[None, :, None, None]
    h = jnp.tanh(h)
    mean = jnp.mean(h, axis=(0, 2, 3), keepdims=True)
    var = jnp.mean((h - mean) ** 2, axis=(0, 2, 3), keepdims=True)
    h = (h - mean) / jnp.sqrt(var + BN_EPS)
    h = h * gamma[None, :, None, None] + beta[None, :, None, None]
    h = lax.conv_general_dilated(h, w2, (1, 1), "SAME",
                                 dimension_numbers=dn) + b2[None, :, None, None]
    h = jnp.tanh(h)
    if ws is None:
        sc = x
    else:
        sc = lax.conv_general_dilated(x, ws, (1, 1), "VALID",
                                      dimension_numbers=dn) + bs[None, :, None, None]
    return h + sc


def init_params(key, in_channels, out_channels):
    ks = jax.random.split(key, 6)
    params = {
        "w1": 0.1 * jax.random.normal(ks[0], (out_channels, in_channels, 3, 3), jnp.float32),
        "b1": 0.1 * jax.random.normal(ks[1], (out_channels,), jnp.float32),
        "gamma": jnp.ones((out_channels,), jnp.float32),   # nn.BatchNorm2d default
        "beta": jnp.zeros((out_channels,), jnp.float32),
        "w2": 0.1 * jax.random.normal(ks[2], (out_channels, out_channels, 3, 3), jnp.float32),
        "b2": 0.1 * jax.random.normal(ks[3], (out_channels,), jnp.float32),
    }
    if in_channels == out_channels:
        params["ws"] = None
        params["bs"] = None
    else:
        params["ws"] = 0.1 * jax.random.normal(ks[4], (out_channels, in_channels, 1, 1), jnp.float32)
        params["bs"] = 0.1 * jax.random.normal(ks[5], (out_channels,), jnp.float32)
    return params


if __name__ == "__main__":
    key = jax.random.PRNGKey(0)
    kx1, kp1, kx2, kp2 = jax.random.split(key, 4)

    pallas_fn = jax.jit(residual_layer_pallas)

    # bf16 MXU conv inputs (f32 accumulation, f32 shortcut/BN) => bf16-level tol.
    RTOL, ATOL = 2e-2, 2e-2

    # --- projection-shortcut path (Cin != Cout) ---
    N, Cin, Cout, H, W = 2, 4, 8, 16, 16
    x = jax.random.normal(kx1, (N, Cin, H, W), jnp.float32)
    params = init_params(kp1, Cin, Cout)
    out = jax.block_until_ready(pallas_fn(x, params))
    ref = jax.block_until_ready(residual_layer_reference(x, params))
    assert out.shape == (N, Cout, H, W)
    np.testing.assert_allclose(np.asarray(out), np.asarray(ref),
                               rtol=RTOL, atol=ATOL)

    # --- identity-shortcut path (Cin == Cout) ---
    x2 = jax.random.normal(kx2, (N, Cout, H, W), jnp.float32)
    params2 = init_params(kp2, Cout, Cout)
    out2 = jax.block_until_ready(pallas_fn(x2, params2))
    ref2 = jax.block_until_ready(residual_layer_reference(x2, params2))
    np.testing.assert_allclose(np.asarray(out2), np.asarray(ref2),
                               rtol=RTOL, atol=ATOL)

    print("KERNEL_OK")
</pallas_src>

<mosaic_0001>
module attributes {stable_mosaic.version = 11 : i64} {
  func.func @_conv1_stats_kernel(%arg0: i32, %arg1: memref<1x16x64xf32, #tpu.memory_space<vmem>>, %arg2: memref<3x64x128xbf16, #tpu.memory_space<vmem>>, %arg3: memref<1x128xf32, #tpu.memory_space<vmem>>, %arg4: memref<1x16x128xbf16, #tpu.memory_space<vmem>>, %arg5: memref<1x1x128xf32, #tpu.memory_space<vmem>>, %arg6: memref<1x1x128xf32, #tpu.memory_space<vmem>>) attributes {dimension_semantics = [#tpu.dimension_semantics<parallel>], iteration_bounds = array<i64: 2>, scalar_prefetch = 0 : i64, scratch_operands = 0 : i64, tpu.core_type = #tpu.core_type<tc>, window_params = [{transform_indices = @transform_0, window_bounds = array<i64: 1, 16, 64>}, {pipeline_mode = #tpu.pipeline_mode<synchronous>, transform_indices = @transform_1, window_bounds = array<i64: 3, 64, 128>}, {pipeline_mode = #tpu.pipeline_mode<synchronous>, transform_indices = @transform_2, window_bounds = array<i64: 1, 128>}, {transform_indices = @transform_3, window_bounds = array<i64: 1, 16, 128>}, {transform_indices = @transform_4, window_bounds = array<i64: 1, 1, 128>}, {transform_indices = @transform_5, window_bounds = array<i64: 1, 1, 128>}]} {
    %c0 = arith.constant 0 : index
    %c0_0 = arith.constant 0 : index
    %c0_1 = arith.constant 0 : index
    %0 = vector.load %arg1[%c0, %c0_0, %c0_1] : memref<1x16x64xf32, #tpu.memory_space<vmem>>, vector<1x16x64xf32>
    %1 = vector.shape_cast %0 : vector<1x16x64xf32> to vector<16x64xf32>
    %2 = arith.truncf %1 : vector<16x64xf32> to vector<16x64xbf16>
    %3 = tpu.iota {dimensions = array<i32: 0>} : vector<16x128xi32>
    %c1 = arith.constant 1 : index
    %c0_2 = arith.constant 0 : index
    %c0_3 = arith.constant 0 : index
    %4 = vector.load %arg2[%c1, %c0_2, %c0_3] : memref<3x64x128xbf16, #tpu.memory_space<vmem>>, vector<1x64x128xbf16>
    %5 = vector.shape_cast %4 : vector<1x64x128xbf16> to vector<64x128xbf16>
    %cst = arith.constant dense<0.000000e+00> : vector<16x128xf32>
    %6 = tpu.matmul %2, %5, %cst {dimension_numbers = #tpu.dot_dimension_numbers<[1], [0], [0], [1], [0, 0, 1, 1], [], []>} : vector<16x64xbf16>, vector<64x128xbf16>, vector<16x128xf32> -> vector<16x128xf32>
    %c0_4 = arith.constant 0 : index
    %c0_5 = arith.constant 0 : index
    %c0_6 = arith.constant 0 : index
    %7 = vector.load %arg2[%c0_4, %c0_5, %c0_6] : memref<3x64x128xbf16, #tpu.memory_space<vmem>>, vector<1x64x128xbf16>
    %8 = vector.shape_cast %7 : vector<1x64x128xbf16> to vector<64x128xbf16>
    %cst_7 = arith.constant dense<0.000000e+00> : vector<16x128xf32>
    %9 = tpu.matmul %2, %8, %cst_7 {dimension_numbers = #tpu.dot_dimension_numbers<[1], [0], [0], [1], [0, 0, 1, 1], [], []>} : vector<16x64xbf16>, vector<64x128xbf16>, vector<16x128xf32> -> vector<16x128xf32>
    %c0_i32 = arith.constant 0 : i32
    %10 = vector.broadcast %c0_i32 : i32 to vector<16x128xi32>
    %11 = arith.cmpi eq, %3, %10 : vector<16x128xi32>
    %c1_i32 = arith.constant 1 : i32
    %12 = tpu.dynamic_rotate %9 by %c1_i32 dim 0 : vector<16x128xf32>, i32 -> vector<16x128xf32>
    %cst_8 = arith.constant 0.000000e+00 : f32
    %13 = vector.broadcast %cst_8 : f32 to vector<16x128xf32>
    %14 = arith.select %11, %13, %12 : vector<16x128xi1>, vector<16x128xf32>
    %15 = arith.addf %6, %14 : vector<16x128xf32>
    %c2 = arith.constant 2 : index
    %c0_9 = arith.constant 0 : index
    %c0_10 = arith.constant 0 : index
    %16 = vector.load %arg2[%c2, %c0_9, %c0_10] : memref<3x64x128xbf16, #tpu.memory_space<vmem>>, vector<1x64x128xbf16>
    %17 = vector.shape_cast %16 : vector<1x64x128xbf16> to vector<64x128xbf16>
    %cst_11 = arith.constant dense<0.000000e+00> : vector<16x128xf32>
    %18 = tpu.matmul %2, %17, %cst_11 {dimension_numbers = #tpu.dot_dimension_numbers<[1], [0], [0], [1], [0, 0, 1, 1], [], []>} : vector<16x64xbf16>, vector<64x128xbf16>, vector<16x128xf32> -> vector<16x128xf32>
    %c15_i32 = arith.constant 15 : i32
    %19 = vector.broadcast %c15_i32 : i32 to vector<16x128xi32>
    %20 = arith.cmpi eq, %3, %19 : vector<16x128xi32>
    %c15_i32_12 = arith.constant 15 : i32
    %21 = tpu.dynamic_rotate %18 by %c15_i32_12 dim 0 : vector<16x128xf32>, i32 -> vector<16x128xf32>
    %cst_13 = arith.constant 0.000000e+00 : f32
    %22 = vector.broadcast %cst_13 : f32 to vector<16x128xf32>
    %23 = arith.select %20, %22, %21 : vector<16x128xi1>, vector<16x128xf32>
    %24 = arith.addf %15, %23 : vector<16x128xf32>
    %c0_14 = arith.constant 0 : index
    %c0_15 = arith.constant 0 : index
    %25 = vector.load %arg3[%c0_14, %c0_15] : memref<1x128xf32, #tpu.memory_space<vmem>>, vector<1x128xf32>
    %26 = vector.broadcast %25 : vector<1x128xf32> to vector<16x128xf32>
    %27 = arith.addf %24, %26 : vector<16x128xf32>
    %28 = math.tanh %27 : vector<16x128xf32>
    %29 = vector.shape_cast %28 : vector<16x128xf32> to vector<1x16x128xf32>
    %30 = arith.truncf %29 : vector<1x16x128xf32> to vector<1x16x128xbf16>
    %c0_16 = arith.constant 0 : index
    %c0_17 = arith.constant 0 : index
    %c0_18 = arith.constant 0 : index
    %31 = vector.load %arg4[%c0_16, %c0_17, %c0_18] : memref<1x16x128xbf16, #tpu.memory_space<vmem>>, vector<1x16x128xbf16>
    tpu.vector_store %arg4[%c0_16, %c0_17, %c0_18], %30 {strides = array<i32>} : memref<1x16x128xbf16, #tpu.memory_space<vmem>>, vector<1x16x128xbf16>,
    %cst_19 = arith.constant dense<0.000000e+00> : vector<128xf32>
    %32 = vector.multi_reduction <add>, %28, %cst_19 [0] : vector<16x128xf32> to vector<128xf32>
    %33 = vector.shape_cast %32 : vector<128xf32> to vector<1x1x128xf32>
    %c0_20 = arith.constant 0 : index
    %c0_21 = arith.constant 0 : index
    %c0_22 = arith.constant 0 : index
    %34 = vector.load %arg5[%c0_20, %c0_21, %c0_22] : memref<1x1x128xf32, #tpu.memory_space<vmem>>, vector<1x1x128xf32>
    tpu.vector_store %arg5[%c0_20, %c0_21, %c0_22], %33 {strides = array<i32>} : memref<1x1x128xf32, #tpu.memory_space<vmem>>, vector<1x1x128xf32>,
    %35 = arith.mulf %28, %28 : vector<16x128xf32>
    %cst_23 = arith.constant dense<0.000000e+00> : vector<128xf32>
    %36 = vector.multi_reduction <add>, %35, %cst_23 [0] : vector<16x128xf32> to vector<128xf32>
    %37 = vector.shape_cast %36 : vector<128xf32> to vector<1x1x128xf32>
    %c0_24 = arith.constant 0 : index
    %c0_25 = arith.constant 0 : index
    %c0_26 = arith.constant 0 : index
    %38 = vector.load %arg6[%c0_24, %c0_25, %c0_26] : memref<1x1x128xf32, #tpu.memory_space<vmem>>, vector<1x1x128xf32>
    tpu.vector_store %arg6[%c0_24, %c0_25, %c0_26], %37 {strides = array<i32>} : memref<1x1x128xf32, #tpu.memory_space<vmem>>, vector<1x1x128xf32>,
    return
  }
  func.func @transform_0(%arg0: i32) -> (i32, i32, i32) {
    %c0_i32 = arith.constant 0 : i32
    %c0_i32_0 = arith.constant 0 : i32
    %c0_i32_1 = arith.constant 0 : i32
    return %arg0, %c0_i32, %c0_i32_0 : i32, i32, i32
  }
  func.func @transform_1(%arg0: i32) -> (i32, i32, i32) {
    %c0_i32 = arith.constant 0 : i32
    %c0_i32_0 = arith.constant 0 : i32
    %c0_i32_1 = arith.constant 0 : i32
    %c0_i32_2 = arith.constant 0 : i32
    return %c0_i32, %c0_i32_0, %c0_i32_1 : i32, i32, i32
  }
  func.func @transform_2(%arg0: i32) -> (i32, i32) {
    %c0_i32 = arith.constant 0 : i32
    %c0_i32_0 = arith.constant 0 : i32
    %c0_i32_1 = arith.constant 0 : i32
    return %c0_i32, %c0_i32_0 : i32, i32
  }
  func.func @transform_3(%arg0: i32) -> (i32, i32, i32) {
    %c0_i32 = arith.constant 0 : i32
    %c0_i32_0 = arith.constant 0 : i32
    %c0_i32_1 = arith.constant 0 : i32
    return %arg0, %c0_i32, %c0_i32_0 : i32, i32, i32
  }
  func.func @transform_4(%arg0: i32) -> (i32, i32, i32) {
    %c0_i32 = arith.constant 0 : i32
    %c0_i32_0 = arith.constant 0 : i32
    %c0_i32_1 = arith.constant 0 : i32
    return %arg0, %c0_i32, %c0_i32_0 : i32, i32, i32
  }
  func.func @transform_5(%arg0: i32) -> (i32, i32, i32) {
    %c0_i32 = arith.constant 0 : i32
    %c0_i32_0 = arith.constant 0 : i32
    %c0_i32_1 = arith.constant 0 : i32
    return %arg0, %c0_i32, %c0_i32_0 : i32, i32, i32
  }
}

module attributes {stable_mosaic.version = 11 : i64} {
  func.func @_bn_conv2_shortcut_kernel(%arg0: i32, %arg1: memref<1x16x128xbf16, #tpu.memory_space<vmem>>, %arg2: memref<1x16x64xf32, #tpu.memory_space<vmem>>, %arg3: memref<1x128xf32, #tpu.memory_space<vmem>>, %arg4: memref<1x128xf32, #tpu.memory_space<vmem>>, %arg5: memref<3x128x128xbf16, #tpu.memory_space<vmem>>, %arg6: memref<1x128xf32, #tpu.memory_space<vmem>>, %arg7: memref<64x128xf32, #tpu.memory_space<vmem>>, %arg8: memref<1x128xf32, #tpu.memory_space<vmem>>, %arg9: memref<1x16x128xf32, #tpu.memory_space<vmem>>) attributes {dimension_semantics = [#tpu.dimension_semantics<parallel>], iteration_bounds = array<i64: 2>, scalar_prefetch = 0 : i64, scratch_operands = 0 : i64, tpu.core_type = #tpu.core_type<tc>, window_params = [{transform_indices = @transform_0, window_bounds = array<i64: 1, 16, 128>}, {transform_indices = @transform_1, window_bounds = array<i64: 1, 16, 64>}, {pipeline_mode = #tpu.pipeline_mode<synchronous>, transform_indices = @transform_2, window_bounds = array<i64: 1, 128>}, {pipeline_mode = #tpu.pipeline_mode<synchronous>, transform_indices = @transform_3, window_bounds = array<i64: 1, 128>}, {pipeline_mode = #tpu.pipeline_mode<synchronous>, transform_indices = @transform_4, window_bounds = array<i64: 3, 128, 128>}, {pipeline_mode = #tpu.pipeline_mode<synchronous>, transform_indices = @transform_5, window_bounds = array<i64: 1, 128>}, {pipeline_mode = #tpu.pipeline_mode<synchronous>, transform_indices = @transform_6, window_bounds = array<i64: 64, 128>}, {pipeline_mode = #tpu.pipeline_mode<synchronous>, transform_indices = @transform_7, window_bounds = array<i64: 1, 128>}, {transform_indices = @transform_8, window_bounds = array<i64: 1, 16, 128>}]} {
    %c0 = arith.constant 0 : index
    %c0_0 = arith.constant 0 : index
    %c0_1 = arith.constant 0 : index
    %0 = vector.load %arg1[%c0, %c0_0, %c0_1] : memref<1x16x128xbf16, #tpu.memory_space<vmem>>, vector<1x16x128xbf16>
    %1 = vector.shape_cast %0 : vector<1x16x128xbf16> to vector<16x128xbf16>
    %2 = arith.extf %1 : vector<16x128xbf16> to vector<16x128xf32>
    %c0_2 = arith.constant 0 : index
    %c0_3 = arith.constant 0 : index
    %3 = vector.load %arg3[%c0_2, %c0_3] : memref<1x128xf32, #tpu.memory_space<vmem>>, vector<1x128xf32>
    %4 = vector.broadcast %3 : vector<1x128xf32> to vector<16x128xf32>
    %5 = arith.mulf %2, %4 : vector<16x128xf32>
    %c0_4 = arith.constant 0 : index
    %c0_5 = arith.constant 0 : index
    %6 = vector.load %arg4[%c0_4, %c0_5] : memref<1x128xf32, #tpu.memory_space<vmem>>, vector<1x128xf32>
    %7 = vector.broadcast %6 : vector<1x128xf32> to vector<16x128xf32>
    %8 = arith.addf %5, %7 : vector<16x128xf32>
    %9 = arith.truncf %8 : vector<16x128xf32> to vector<16x128xbf16>
    %10 = tpu.iota {dimensions = array<i32: 0>} : vector<16x128xi32>
    %c1 = arith.constant 1 : index
    %c0_6 = arith.constant 0 : index
    %c0_7 = arith.constant 0 : index
    %11 = vector.load %arg5[%c1, %c0_6, %c0_7] : memref<3x128x128xbf16, #tpu.memory_space<vmem>>, vector<1x128x128xbf16>
    %12 = vector.shape_cast %11 : vector<1x128x128xbf16> to vector<128x128xbf16>
    %cst = arith.constant dense<0.000000e+00> : vector<16x128xf32>
    %13 = tpu.matmul %9, %12, %cst {dimension_numbers = #tpu.dot_dimension_numbers<[1], [0], [0], [1], [0, 0, 1, 1], [], []>} : vector<16x128xbf16>, vector<128x128xbf16>, vector<16x128xf32> -> vector<16x128xf32>
    %c0_8 = arith.constant 0 : index
    %c0_9 = arith.constant 0 : index
    %c0_10 = arith.constant 0 : index
    %14 = vector.load %arg5[%c0_8, %c0_9, %c0_10] : memref<3x128x128xbf16, #tpu.memory_space<vmem>>, vector<1x128x128xbf16>
    %15 = vector.shape_cast %14 : vector<1x128x128xbf16> to vector<128x128xbf16>
    %cst_11 = arith.constant dense<0.000000e+00> : vector<16x128xf32>
    %16 = tpu.matmul %9, %15, %cst_11 {dimension_numbers = #tpu.dot_dimension_numbers<[1], [0], [0], [1], [0, 0, 1, 1], [], []>} : vector<16x128xbf16>, vector<128x128xbf16>, vector<16x128xf32> -> vector<16x128xf32>
    %c0_i32 = arith.constant 0 : i32
    %17 = vector.broadcast %c0_i32 : i32 to vector<16x128xi32>
    %18 = arith.cmpi eq, %10, %17 : vector<16x128xi32>
    %c1_i32 = arith.constant 1 : i32
    %19 = tpu.dynamic_rotate %16 by %c1_i32 dim 0 : vector<16x128xf32>, i32 -> vector<16x128xf32>
    %cst_12 = arith.constant 0.000000e+00 : f32
    %20 = vector.broadcast %cst_12 : f32 to vector<16x128xf32>
    %21 = arith.select %18, %20, %19 : vector<16x128xi1>, vector<16x128xf32>
    %22 = arith.addf %13, %21 : vector<16x128xf32>
    %c2 = arith.constant 2 : index
    %c0_13 = arith.constant 0 : index
    %c0_14 = arith.constant 0 : index
    %23 = vector.load %arg5[%c2, %c0_13, %c0_14] : memref<3x128x128xbf16, #tpu.memory_space<vmem>>, vector<1x128x128xbf16>
    %24 = vector.shape_cast %23 : vector<1x128x128xbf16> to vector<128x128xbf16>
    %cst_15 = arith.constant dense<0.000000e+00> : vector<16x128xf32>
    %25 = tpu.matmul %9, %24, %cst_15 {dimension_numbers = #tpu.dot_dimension_numbers<[1], [0], [0], [1], [0, 0, 1, 1], [], []>} : vector<16x128xbf16>, vector<128x128xbf16>, vector<16x128xf32> -> vector<16x128xf32>
    %c15_i32 = arith.constant 15 : i32
    %26 = vector.broadcast %c15_i32 : i32 to vector<16x128xi32>
    %27 = arith.cmpi eq, %10, %26 : vector<16x128xi32>
    %c15_i32_16 = arith.constant 15 : i32
    %28 = tpu.dynamic_rotate %25 by %c15_i32_16 dim 0 : vector<16x128xf32>, i32 -> vector<16x128xf32>
    %cst_17 = arith.constant 0.000000e+00 : f32
    %29 = vector.broadcast %cst_17 : f32 to vector<16x128xf32>
    %30 = arith.select %27, %29, %28 : vector<16x128xi1>, vector<16x128xf32>
    %31 = arith.addf %22, %30 : vector<16x128xf32>
    %c0_18 = arith.constant 0 : index
    %c0_19 = arith.constant 0 : index
    %32 = vector.load %arg6[%c0_18, %c0_19] : memref<1x128xf32, #tpu.memory_space<vmem>>, vector<1x128xf32>
    %33 = vector.broadcast %32 : vector<1x128xf32> to vector<16x128xf32>
    %34 = arith.addf %31, %33 : vector<16x128xf32>
    %35 = math.tanh %34 : vector<16x128xf32>
    %c0_20 = arith.constant 0 : index
    %c0_21 = arith.constant 0 : index
    %c0_22 = arith.constant 0 : index
    %36 = vector.load %arg2[%c0_20, %c0_21, %c0_22] : memref<1x16x64xf32, #tpu.memory_space<vmem>>, vector<1x16x64xf32>
    %37 = vector.shape_cast %36 : vector<1x16x64xf32> to vector<16x64xf32>
    %c0_23 = arith.constant 0 : index
    %c0_24 = arith.constant 0 : index
    %38 = vector.load %arg7[%c0_23, %c0_24] : memref<64x128xf32, #tpu.memory_space<vmem>>, vector<64x128xf32>
    %cst_25 = arith.constant dense<0.000000e+00> : vector<16x128xf32>
    %39 = tpu.matmul %37, %38, %cst_25 {dimension_numbers = #tpu.dot_dimension_numbers<[1], [0], [0], [1], [0, 0, 1, 1], [], []>} : vector<16x64xf32>, vector<64x128xf32>, vector<16x128xf32> -> vector<16x128xf32>
    %c0_26 = arith.constant 0 : index
    %c0_27 = arith.constant 0 : index
    %40 = vector.load %arg8[%c0_26, %c0_27] : memref<1x128xf32, #tpu.memory_space<vmem>>, vector<1x128xf32>
    %41 = vector.broadcast %40 : vector<1x128xf32> to vector<16x128xf32>
    %42 = arith.addf %39, %41 : vector<16x128xf32>
    %43 = arith.addf %35, %42 : vector<16x128xf32>
    %44 = vector.shape_cast %43 : vector<16x128xf32> to vector<1x16x128xf32>
    %c0_28 = arith.constant 0 : index
    %c0_29 = arith.constant 0 : index
    %c0_30 = arith.constant 0 : index
    %45 = vector.load %arg9[%c0_28, %c0_29, %c0_30] : memref<1x16x128xf32, #tpu.memory_space<vmem>>, vector<1x16x128xf32>
    tpu.vector_store %arg9[%c0_28, %c0_29, %c0_30], %44 {strides = array<i32>} : memref<1x16x128xf32, #tpu.memory_space<vmem>>, vector<1x16x128xf32>,
    return
  }
  func.func @transform_0(%arg0: i32) -> (i32, i32, i32) {
    %c0_i32 = arith.constant 0 : i32
    %c0_i32_0 = arith.constant 0 : i32
    %c0_i32_1 = arith.constant 0 : i32
    return %arg0, %c0_i32, %c0_i32_0 : i32, i32, i32
  }
  func.func @transform_1(%arg0: i32) -> (i32, i32, i32) {
    %c0_i32 = arith.constant 0 : i32
    %c0_i32_0 = arith.constant 0 : i32
    %c0_i32_1 = arith.constant 0 : i32
    return %arg0, %c0_i32, %c0_i32_0 : i32, i32, i32
  }
  func.func @transform_2(%arg0: i32) -> (i32, i32) {
    %c0_i32 = arith.constant 0 : i32
    %c0_i32_0 = arith.constant 0 : i32
    %c0_i32_1 = arith.constant 0 : i32
    return %c0_i32, %c0_i32_0 : i32, i32
  }
  func.func @transform_3(%arg0: i32) -> (i32, i32) {
    %c0_i32 = arith.constant 0 : i32
    %c0_i32_0 = arith.constant 0 : i32
    %c0_i32_1 = arith.constant 0 : i32
    return %c0_i32, %c0_i32_0 : i32, i32
  }
  func.func @transform_4(%arg0: i32) -> (i32, i32, i32) {
    %c0_i32 = arith.constant 0 : i32
    %c0_i32_0 = arith.constant 0 : i32
    %c0_i32_1 = arith.constant 0 : i32
    %c0_i32_2 = arith.constant 0 : i32
    return %c0_i32, %c0_i32_0, %c0_i32_1 : i32, i32, i32
  }
  func.func @transform_5(%arg0: i32) -> (i32, i32) {
    %c0_i32 = arith.constant 0 : i32
    %c0_i32_0 = arith.constant 0 : i32
    %c0_i32_1 = arith.constant 0 : i32
    return %c0_i32, %c0_i32_0 : i32, i32
  }
  func.func @transform_6(%arg0: i32) -> (i32, i32) {
    %c0_i32 = arith.constant 0 : i32
    %c0_i32_0 = arith.constant 0 : i32
    %c0_i32_1 = arith.constant 0 : i32
    return %c0_i32, %c0_i32_0 : i32, i32
  }
  func.func @transform_7(%arg0: i32) -> (i32, i32) {
    %c0_i32 = arith.constant 0 : i32
    %c0_i32_0 = arith.constant 0 : i32
    %c0_i32_1 = arith.constant 0 : i32
    return %c0_i32, %c0_i32_0 : i32, i32
  }
  func.func @transform_8(%arg0: i32) -> (i32, i32, i32) {
    %c0_i32 = arith.constant 0 : i32
    %c0_i32_0 = arith.constant 0 : i32
    %c0_i32_1 = arith.constant 0 : i32
    return %arg0, %c0_i32, %c0_i32_0 : i32, i32, i32
  }
}

</mosaic_0001>

<llo_original>
// kernel: tile.28
$region0: #{tile.28}
  #allocation0 [shape = 's32[1]{0}', space=sflag, size = 0x4, scoped, tag = 'scoped memory for tile.28']
  %s0 = inlined_call_operand.vmem [shape: f32[8], index: 0, kind: input, shape index: {}]
  %s1 = inlined_call_operand.vmem [shape: f32[16,8], index: 1, kind: output, shape index: {}]
  // Predicated region
  $region2: #{tile.28} parent=0 // pred_check
    _
  $region3: #{tile.28} parent=0 // pred_check_branch
    %3 = sbr.rel (0) target = $region5
  $region4: #{tile.28} parent=0 // pred_region
    _
  $region5: #{tile.28} parent=0 // pred_fallthru
    _
  %v4 = vld [vmem:[%s0] ss:$0 sm:$0xff]
  %5 = vst [vmem:[%s1] sm:$0xff] %v4
  %s6 = scalar_lea.vmem %s1, 8
  %7 = vst [vmem:[%s6] sm:$0xff] %v4

// kernel: tile.29
$region0: #{tile.29}
  %s0 = inlined_call_operand.vmem [shape: f32[16,8], index: 0, kind: input, shape index: {}]
  %s1 = inlined_call_operand.vmem [shape: f32[1,128], index: 1, kind: output, shape index: {}]
  $region1: #{tile.29} parent=0
    #allocation0 [shape = 'u8[4096]{0}', space=vmem, size = 0x1000, scoped, tag = 'scoped mem for output reshape']
    %v2 = vld [vmem:[%s0] sm:$0x1]
    %vm3 = vcmask 64512
    %4 = vst.msk [vmem:[#allocation0] sm:$0x1] %vm3, %v2
    %s5 = scalar_lea.vmem %s0, 15
    %v6 = vld [vmem:[%s5] sm:$0x1]
    %7 = vrot.lane.b32.xlu0 %v6, 120
    %v8 = vpop.permute.xlu0 %7
    %vm9 = vcmask 1048512
    %10 = vst.msk [vmem:[#allocation0] sm:$0x1] %vm9, %v8
    %s11 = scalar_lea.vmem %s0, 14
    %v12 = vld [vmem:[%s11] sm:$0x1]
    %13 = vrot.lane.b32.xlu0 %v12, 112
    %v14 = vpop.permute.xlu0 %13
    %vm15 = vcmask 982912
    %16 = vst.msk [vmem:[#allocation0] sm:$0x1] %vm15, %v14
    %s17 = scalar_lea.vmem %s0, 13
    %v18 = vld [vmem:[%s17] sm:$0x1]
    %19 = vrot.lane.b32.xlu0 %v18, 104
    %v20 = vpop.permute.xlu0 %19
    %vm21 = vcmask 917312
    %22 = vst.msk [vmem:[#allocation0] sm:$0x1] %vm21, %v20
    %s23 = scalar_lea.vmem %s0, 12
    %v24 = vld [vmem:[%s23] sm:$0x1]
    %25 = vrot.lane.b32.xlu0 %v24, 96
    %v26 = vpop.permute.xlu0 %25
    %vm27 = vcmask 851712
    %28 = vst.msk [vmem:[#allocation0] sm:$0x1] %vm27, %v26
    %s29 = scalar_lea.vmem %s0, 11
    %v30 = vld [vmem:[%s29] sm:$0x1]
    %31 = vrot.lane.b32.xlu0 %v30, 88
    %v32 = vpop.permute.xlu0 %31
    %vm33 = vcmask 786112
    %34 = vst.msk [vmem:[#allocation0] sm:$0x1] %vm33, %v32
    %s35 = scalar_lea.vmem %s0, 10
    %v36 = vld [vmem:[%s35] sm:$0x1]
    %37 = vrot.lane.b32.xlu0 %v36, 80
    %v38 = vpop.permute.xlu0 %37
    %vm39 = vcmask 720512
    %40 = vst.msk [vmem:[#allocation0] sm:$0x1] %vm39, %v38
    %s41 = scalar_lea.vmem %s0, 9
    %v42 = vld [vmem:[%s41] sm:$0x1]
    %43 = vrot.lane.b32.xlu0 %v42, 72
    %v44 = vpop.permute.xlu0 %43
    %vm45 = vcmask 654912
    %46 = vst.msk [vmem:[#allocation0] sm:$0x1] %vm45, %v44
    %s47 = scalar_lea.vmem %s0, 8
    %v48 = vld [vmem:[%s47] sm:$0x1]
    %49 = vrot.lane.b32.xlu0 %v48, 64
    %v50 = vpop.permute.xlu0 %49
    %vm51 = vcmask 589312
    %52 = vst.msk [vmem:[#allocation0] sm:$0x1] %vm51, %v50
    %s53 = scalar_lea.vmem %s0, 7
    %v54 = vld [vmem:[%s53] sm:$0x1]
    %55 = vrot.lane.b32.xlu0 %v54, 56
    %v56 = vpop.permute.xlu0 %55
    %vm57 = vcmask 523712
    %58 = vst.msk [vmem:[#allocation0] sm:$0x1] %vm57, %v56
    %s59 = scalar_lea.vmem %s0, 6
    %v60 = vld [vmem:[%s59] sm:$0x1]
    %61 = vrot.lane.b32.xlu0 %v60, 48
    %v62 = vpop.permute.xlu0 %61
    %vm63 = vcmask 458112
    %64 = vst.msk [vmem:[#allocation0] sm:$0x1] %vm63, %v62
    %s65 = scalar_lea.vmem %s0, 5
    %v66 = vld [vmem:[%s65] sm:$0x1]
    %67 = vrot.lane.b32.xlu0 %v66, 40
    %v68 = vpop.permute.xlu0 %67
    %vm69 = vcmask 392512
    %70 = vst.msk [vmem:[#allocation0] sm:$0x1] %vm69, %v68
    %s71 = scalar_lea.vmem %s0, 4
    %v72 = vld [vmem:[%s71] sm:$0x1]
    %73 = vrot.lane.b32.xlu0 %v72, 32
    %v74 = vpop.permute.xlu0 %73
    %vm75 = vcmask 326912
    %76 = vst.msk [vmem:[#allocation0] sm:$0x1] %vm75, %v74
    %s77 = scalar_lea.vmem %s0, 3
    %v78 = vld [vmem:[%s77] sm:$0x1]
    %79 = vrot.lane.b32.xlu0 %v78, 24
    %v80 = vpop.permute.xlu0 %79
    %vm81 = vcmask 261312
    %82 = vst.msk [vmem:[#allocation0] sm:$0x1] %vm81, %v80
    %s83 = scalar_lea.vmem %s0, 2
    %v84 = vld [vmem:[%s83] sm:$0x1]
    %85 = vrot.lane.b32.xlu0 %v84, 16
    %v86 = vpop.permute.xlu0 %85
    %vm87 = vcmask 195712
    %88 = vst.msk [vmem:[#allocation0] sm:$0x1] %vm87, %v86
    %s89 = scalar_lea.vmem %s0, 1
    %v90 = vld [vmem:[%s89] sm:$0x1]
    %91 = vrot.lane.b32.xlu0 %v90, 8
    %v92 = vpop.permute.xlu0 %91
    %vm93 = vcmask 130112
    %94 = vst.msk [vmem:[#allocation0] sm:$0x1] %vm93, %v92
    %s96 = sshllo.u32 0, 1
    %v98 = vld [vmem:[#allocation0] sm:%s96]
    %s99 = sshllo.u32 0, 1
    %100 = vst [vmem:[%s1] sm:%s99] %v98

// kernel: residual_layer_pallas.2
$region0: #{residual_layer_pallas.2}
  #allocation0 [shape = 'u32[]', space=smem, size = 0x4, offset = 0x4, fixed_abs, tag = 'smem constant byte address 0x4 - core index']
  #allocation1 [shape = 'u32[144,128]{1,0:T(1,128)}', space=vmem, size = 0x12000, scoped, tag = 'internal scratch']
  %s0 = inlined_call_operand.vmem [shape: f32[2,16,64], index: 0, kind: input, shape index: {}]
  %s1 = inlined_call_operand.vmem [shape: bf16[3,64,128], index: 1, kind: input, shape index: {}]
  %s2 = inlined_call_operand.vmem [shape: f32[1,128], index: 2, kind: input, shape index: {}]
  %s3 = inlined_call_operand.vmem [shape: bf16[2,16,128], index: 3, kind: output, shape index: {0}]
  %s4 = inlined_call_operand.vmem [shape: f32[2,1,128], index: 4, kind: output, shape index: {1}]
  %s5 = inlined_call_operand.vmem [shape: f32[2,1,128], index: 5, kind: output, shape index: {2}]
  %6 = xla_tuple %s3, %s4, %s5
  %s7 = sld [smem:[#allocation0]]
  $region61: #{residual_layer_pallas.2} parent=0
    _
  %s9 = ssub.s32 1, %s7
  %s10 = scalar_select 0, %s9, %s7
  loop: start=0, step=1, limit=4
  $region2: #{residual_layer_pallas.2} parent=0 // loop_pre_header
    _
  $region3: #{residual_layer_pallas.2} parent=0 // loop_header
    %s12 = sphi 0, %s16
    %p13 = scmp.ge.s32.totalorder %s12, 4
    %s22 = sphi 0, %s24
    %s25 = sphi 0, %s22
    %s26 = sphi 0, %s25
    %s42 = sphi 0, %s26
    %s46 = sphi 0, %s46
    %s48 = sphi 0, %s46
    %s49 = sphi 0, %s48
    %s63 = sphi 0, %s49
    %s67 = sphi 0, %s67
    %s69 = sphi 0, %s67
    %s70 = sphi 0, %s69
    %s84 = sphi 0, %s70
    %s90 = sphi 0, %s92
    %s93 = sphi 0, %s90
    %s94 = sphi 0, %s93
    %s110 = sphi 0, %s94
    %s116 = sphi 0, %s118
    %s119 = sphi 0, %s116
    %s120 = sphi 0, %s119
    %s136 = sphi 0, %s120
    %s142 = sphi 0, %s144
    %s145 = sphi 0, %s142
    %s146 = sphi 0, %s145
    %s162 = sphi 0, %s146
  $region4: #{residual_layer_pallas.2} parent=0 // loop_header_branch
    %15 = sbr.rel (%p13) target = $region8
  $region5: #{residual_layer_pallas.2} parent=0 // loop_body
    %s17 = ssub.s32 %s12, 1
    %s18 = ssub.s32 %s12, 2
    %s19 = sadd.s32 %s12, 1
    %s20 = ssub.s32 %s12, %s19
    %p21 = scmp.eq.s32.totalorder %s20, 0
    %s23 = sadd.s32 %s22, 1
    %s24 = scalar_select %p21, %s22, %s23
    %p27 = pneg %p21
    %p28 = scmp.eq.s32.totalorder %s12, 1
    %p29 = por %p27, %p28
    %p30 = scmp.ne.s32.totalorder %s22, %s25
    %p31 = scmp.eq.s32.totalorder %s12, 0
    %p32 = por %p30, %p31
    %p33 = scmp.ne.s32.totalorder %s22, %s25
    %p34 = scmp.eq.s32.totalorder %s17, 1
    %p35 = por %p33, %p34
    %p36 = scmp.ne.s32.totalorder %s25, %s26
    %p37 = scmp.eq.s32.totalorder %s17, 0
    %p38 = por %p36, %p37
    %p39 = scmp.ne.s32.totalorder %s25, %s26
    %p40 = scmp.eq.s32.totalorder %s18, 1
    %p41 = por %p39, %p40
    %p43 = scmp.ne.s32.totalorder %s26, %s42
    %p44 = scmp.eq.s32.totalorder %s18, 0
    %p45 = por %p43, %p44
    %s47 = sadd.s32 %s46, 1
    %p50 = scmp.eq.s32.totalorder %s12, 1
    %p51 = scmp.ne.s32.totalorder %s46, %s48
    %p52 = scmp.eq.s32.totalorder %s12, 0
    %p53 = por %p51, %p52
    %p54 = scmp.ne.s32.totalorder %s46, %s48
    %p55 = scmp.eq.s32.totalorder %s17, 1
    %p56 = por %p54, %p55
    %p57 = scmp.ne.s32.totalorder %s48, %s49
    %p58 = scmp.eq.s32.totalorder %s17, 0
    %p59 = por %p57, %p58
    %p60 = scmp.ne.s32.totalorder %s48, %s49
    %p61 = scmp.eq.s32.totalorder %s18, 1
    %p62 = por %p60, %p61
    %p64 = scmp.ne.s32.totalorder %s49, %s63
    %p65 = scmp.eq.s32.totalorder %s18, 0
    %p66 = por %p64, %p65
    %s68 = sadd.s32 %s67, 1
    %p71 = scmp.eq.s32.totalorder %s12, 1
    %p72 = scmp.ne.s32.totalorder %s67, %s69
    %p73 = scmp.eq.s32.totalorder %s12, 0
    %p74 = por %p72, %p73
    %p75 = scmp.ne.s32.totalorder %s67, %s69
    %p76 = scmp.eq.s32.totalorder %s17, 1
    %p77 = por %p75, %p76
    %p78 = scmp.ne.s32.totalorder %s69, %s70
    %p79 = scmp.eq.s32.totalorder %s17, 0
    %p80 = por %p78, %p79
    %p81 = scmp.ne.s32.totalorder %s69, %s70
    %p82 = scmp.eq.s32.totalorder %s18, 1
    %p83 = por %p81, %p82
    %p85 = scmp.ne.s32.totalorder %s70, %s84
    %p86 = scmp.eq.s32.totalorder %s18, 0
    %p87 = por %p85, %p86
    %s88 = ssub.s32 %s12, %s19
    %p89 = scmp.eq.s32.totalorder %s88, 0
    %s91 = sadd.s32 %s90, 1
    %s92 = scalar_select %p89, %s90, %s91
    %p95 = pneg %p89
    %p96 = scmp.eq.s32.totalorder %s12, 1
    %p97 = por %p95, %p96
    %p98 = scmp.ne.s32.totalorder %s90, %s93
    %p99 = scmp.eq.s32.totalorder %s12, 0
    %p100 = por %p98, %p99
    %p101 = scmp.ne.s32.totalorder %s90, %s93
    %p102 = scmp.eq.s32.totalorder %s17, 1
    %p103 = por %p101, %p102
    %p104 = scmp.ne.s32.totalorder %s93, %s94
    %p105 = scmp.eq.s32.totalorder %s17, 0
    %p106 = por %p104, %p105
    %p107 = scmp.ne.s32.totalorder %s93, %s94
    %p108 = scmp.eq.s32.totalorder %s18, 1
    %p109 = por %p107, %p108
    %p111 = scmp.ne.s32.totalorder %s94, %s110
    %p112 = scmp.eq.s32.totalorder %s18, 0
    %p113 = por %p111, %p112
    %s114 = ssub.s32 %s12, %s19
    %p115 = scmp.eq.s32.totalorder %s114, 0
    %s117 = sadd.s32 %s116, 1
    %s118 = scalar_select %p115, %s116, %s117
    %p121 = pneg %p115
    %p122 = scmp.eq.s32.totalorder %s12, 1
    %p123 = por %p121, %p122
    %p124 = scmp.ne.s32.totalorder %s116, %s119
    %p125 = scmp.eq.s32.totalorder %s12, 0
    %p126 = por %p124, %p125
    %p127 = scmp.ne.s32.totalorder %s116, %s119
    %p128 = scmp.eq.s32.totalorder %s17, 1
    %p129 = por %p127, %p128
    %p130 = scmp.ne.s32.totalorder %s119, %s120
    %p131 = scmp.eq.s32.totalorder %s17, 0
    %p132 = por %p130, %p131
    %p133 = scmp.ne.s32.totalorder %s119, %s120
    %p134 = scmp.eq.s32.totalorder %s18, 1
    %p135 = por %p133, %p134
    %p137 = scmp.ne.s32.totalorder %s120, %s136
    %p138 = scmp.eq.s32.totalorder %s18, 0
    %p139 = por %p137, %p138
    %s140 = ssub.s32 %s12, %s19
    %p141 = scmp.eq.s32.totalorder %s140, 0
    %s143 = sadd.s32 %s142, 1
    %s144 = scalar_select %p141, %s142, %s143
    %p147 = pneg %p141
    %p148 = scmp.eq.s32.totalorder %s12, 1
    %p149 = por %p147, %p148
    %p150 = scmp.ne.s32.totalorder %s142, %s145
    %p151 = scmp.eq.s32.totalorder %s12, 0
    %p152 = por %p150, %p151
    %p153 = scmp.ne.s32.totalorder %s142, %s145
    %p154 = scmp.eq.s32.totalorder %s17, 1
    %p155 = por %p153, %p154
    %p156 = scmp.ne.s32.totalorder %s145, %s146
    %p157 = scmp.eq.s32.totalorder %s17, 0
    %p158 = por %p156, %p157
    %p159 = scmp.ne.s32.totalorder %s145, %s146
    %p160 = scmp.eq.s32.totalorder %s18, 1
    %p161 = por %p159, %p160
    %p163 = scmp.ne.s32.totalorder %s146, %s162
    %p164 = scmp.eq.s32.totalorder %s18, 0
    %p165 = por %p163, %p164
    %p166 = scmp.le.s32.totalorder 1, %s12
    %p167 = scmp.lt.s32.totalorder %s12, 3
    %p168 = pnand %p166, %p167
    %p169 = pneg %p168
    // Predicated region
    $region9: #{residual_layer_pallas.2} parent=5 // pred_check
      _
    $region10: #{residual_layer_pallas.2} parent=5 // pred_check_branch
      %171 = sbr.rel (%p168) target = $region12
    $region11: #{residual_layer_pallas.2} parent=5 // pred_region
      %s172 = ssub.s32 %s12, 1
      // Predicated region
      $region13: #{residual_layer_pallas.2} parent=11 // pred_check
        %p173 = pneg %p59
      $region14: #{residual_layer_pallas.2} parent=11 // pred_check_branch
        %175 = sbr.rel (%p173) target = $region16
      $region15: #{residual_layer_pallas.2} parent=11 // pred_region
        _
      $region16: #{residual_layer_pallas.2} parent=11 // pred_fallthru
        _
      // Predicated region
      $region17: #{residual_layer_pallas.2} parent=11 // pred_check
        %p176 = pneg %p80
      $region18: #{residual_layer_pallas.2} parent=11 // pred_check_branch
        %178 = sbr.rel (%p176) target = $region20
      $region19: #{residual_layer_pallas.2} parent=11 // pred_region
        _
      $region20: #{residual_layer_pallas.2} parent=11 // pred_fallthru
        _
    $region12: #{residual_layer_pallas.2} parent=5 // pred_fallthru
      _
    %p179 = scmp.lt.s32.totalorder %s12, 2
    // Predicated region
    $region21: #{residual_layer_pallas.2} parent=5 // pred_check
      %p180 = pneg %p179
    $region22: #{residual_layer_pallas.2} parent=5 // pred_check_branch
      %182 = sbr.rel (%p180) target = $region24
    $region23: #{residual_layer_pallas.2} parent=5 // pred_region
      // Predicated region
      $region25: #{residual_layer_pallas.2} parent=23 // pred_check
        %p183 = pneg %p32
      $region26: #{residual_layer_pallas.2} parent=23 // pred_check_branch
        %185 = sbr.rel (%p183) target = $region28
      $region27: #{residual_layer_pallas.2} parent=23 // pred_region
        %p186 = scmp.lt.s32.totalorder %s12, 1
        %s187 = scalar_select %p186, %s12, 1
        %s188 = smul.addr %s187, 2
        %s189 = smul.addr %s188, 8
        %s190 = scalar_lea.vmem %s0, %s189
      $region28: #{residual_layer_pallas.2} parent=23 // pred_fallthru
        _
    $region24: #{residual_layer_pallas.2} parent=5 // pred_fallthru
      _
    %p191 = scmp.le.s32.totalorder 1, %s12
    %p192 = scmp.lt.s32.totalorder %s12, 3
    %p193 = pnand %p191, %p192
    %p194 = pneg %p193
    // Predicated region
    $region29: #{residual_layer_pallas.2} parent=5 // pred_check
      _
    $region30: #{residual_layer_pallas.2} parent=5 // pred_check_branch
      %196 = sbr.rel (%p193) target = $region32
    $region31: #{residual_layer_pallas.2} parent=5 // pred_region
      %s197 = ssub.s32 %s12, 1
      %p198 = scmp.lt.s32.totalorder %s17, 1
      %s199 = scalar_select %p198, %s17, 1
      %s200 = smul.addr %s199, 2
      %s201 = smul.addr %s200, 8
      %s202 = scalar_lea.vmem %s0, %s201
      %p203 = pneg %p38
      %p204 = pneg %p35
      %p205 = pneg %p59
      %p206 = pneg %p56
      %p207 = pneg %p80
      %p208 = pneg %p77
      %p209 = pneg %p106
      %p210 = pneg %p103
      %p211 = scmp.lt.s32.totalorder %s17, 1
      %s212 = scalar_select %p211, %s17, 1
      %s213 = smul.addr %s212, 2
      %s214 = smul.addr %s213, 4
      %s215 = scalar_lea.vmem %s3, %s214
      %p216 = pneg %p132
      %p217 = pneg %p129
      %p218 = scmp.lt.s32.totalorder %s17, 1
      %s219 = scalar_select %p218, %s17, 1
      %s220 = scalar_lea.vmem %s4, %s219
      %p221 = pneg %p158
      %p222 = pneg %p155
      %p223 = scmp.lt.s32.totalorder %s17, 1
      %s224 = scalar_select %p223, %s17, 1
      %s225 = scalar_lea.vmem %s5, %s224
      %p226 = scmp.lt.s32.totalorder %s17, 1
      %s227 = scalar_select %p226, %s17, 1
      %s228 = smul.addr %s227, 2
      %s229 = smul.addr %s228, 8
      %s230 = scalar_lea.vmem %s0, %s229
      %p231 = scmp.lt.s32.totalorder %s17, 1
      %s232 = scalar_select %p231, %s17, 1
      %s233 = smul.addr %s232, 2
      %s234 = smul.addr %s233, 4
      %s235 = scalar_lea.vmem %s3, %s234
      %p236 = scmp.lt.s32.totalorder %s17, 1
      %s237 = scalar_select %p236, %s17, 1
      %s238 = scalar_lea.vmem %s4, %s237
      %p239 = scmp.lt.s32.totalorder %s17, 1
      %s240 = scalar_select %p239, %s17, 1
      %s241 = scalar_lea.vmem %s5, %s240
      %v243 = vld [vmem:[%s230] sm:$0xff]
      %v244 = vld [vmem:[%s230 + $0x8] sm:$0xff]
      %v245 = vpack.c.bf16 %v244, %v243
      %v246 = vlaneseq
      %v247 = vshrl.u32 %v246, 7
      %v248 = vadd.s32 %v247, 8
      %s249 = scalar_lea.vmem %s1, 32
      %v250 = vld [vmem:[%s249] sm:$0xf]
      %v251 = vld [vmem:[%s249 + $0x4] sm:$0xf]
      %v252 = vld [vmem:[%s249 + $0x8] sm:$0xf]
      %v253 = vld [vmem:[%s249 + $0xc] sm:$0xf]
      %v254 = vld [vmem:[%s249 + $0x10] sm:$0xf]
      %v255 = vld [vmem:[%s249 + $0x14] sm:$0xf]
      %v256 = vld [vmem:[%s249 + $0x18] sm:$0xf]
      %v257 = vld [vmem:[%s249 + $0x1c] sm:$0xf]
      %v258 = vld [vmem:[%s1] sm:$0xf]
      %v259 = vld [vmem:[%s1 + $0x4] sm:$0xf]
      %v260 = vld [vmem:[%s1 + $0x8] sm:$0xf]
      %v261 = vld [vmem:[%s1 + $0xc] sm:$0xf]
      %v262 = vld [vmem:[%s1 + $0x10] sm:$0xf]
      %v263 = vld [vmem:[%s1 + $0x14] sm:$0xf]
      %v264 = vld [vmem:[%s1 + $0x18] sm:$0xf]
      %v265 = vld [vmem:[%s1 + $0x1c] sm:$0xf]
      %v274 = vunpack.c.l.b16 %v258
      %v275 = vunpack.c.l.b16 %v259
      %v276 = vunpack.c.l.b16 %v260
      %v277 = vunpack.c.l.b16 %v261
      %v278 = vunpack.c.l.b16 %v262
      %v279 = vunpack.c.l.b16 %v263
      %v280 = vunpack.c.l.b16 %v264
      %v281 = vunpack.c.l.b16 %v265
      %v282 = vpack.c.b16 %v275, %v274
      %v283 = vpack.c.b16 %v277, %v276
      %v284 = vpack.c.b16 %v279, %v278
      %v285 = vpack.c.b16 %v281, %v280
      %vm290 = vcmask 523264
      %v292 = vsel %vm290, %v245, 0
      %294 = vmatprep.subr.bf16.mxu0 0
      %295 = vmatpush1.bf16.msra.mxu0 %v282
      %296 = vmatprep.subr.bf16.mxu0 0
      %297 = vmatpush1.bf16.msra.mxu0 %v283
      %298 = vmatprep.subr.bf16.mxu0 0
      %299 = vmatpush1.bf16.msra.mxu0 %v284
      %300 = vmatprep.subr.bf16.mxu0 0
      %301 = vmatpush1.bf16.msra.mxu0 %v285
      %302 = vmatprep.subr.bf16.mxu0 0
      %303 = vmatpush1.bf16.msra.mxu0 0
      %304 = vmatprep.subr.bf16.mxu0 0
      %305 = vmatpush1.bf16.msra.mxu0 0
      %306 = vmatprep.subr.bf16.mxu0 0
      %307 = vmatpush1.bf16.msra.mxu0 0
      %308 = vmatprep.subr.bf16.mxu0 0
      %309 = vmatpush1.bf16.msra.mxu0 0
      %310 = vmatprep.subr.bf16.mxu0 0
      %311 = vmatpush1.bf16.msra.mxu0 0
      %312 = vmatprep.subr.bf16.mxu0 0
      %313 = vmatpush1.bf16.msra.mxu0 0
      %314 = vmatprep.subr.bf16.mxu0 0
      %315 = vmatpush1.bf16.msra.mxu0 0
      %316 = vmatprep.subr.bf16.mxu0 0
      %317 = vmatpush1.bf16.msra.mxu0 0
      %318 = vmatprep.subr.bf16.mxu0 0
      %319 = vmatpush1.bf16.msra.mxu0 0
      %320 = vmatprep.subr.bf16.mxu0 0
      %321 = vmatpush1.bf16.msra.mxu0 0
      %322 = vmatprep.subr.bf16.mxu0 0
      %323 = vmatpush1.bf16.msra.mxu0 0
      %324 = vmatprep.subr.bf16.mxu0 0
      %325 = vmatpush1.bf16.msra.mxu0 0
      %326 = vmatprep.mubr.bf16.mxu0 0
      %327 = vmatmul.mubr.bf16.gmra.mrb[0].mxu0 %v292
      %v328 = vpop.f32.mrb[0].mxu0
      %v329 = vadd.f32 0.0, %v328
      %v330 = vpop.f32.mrb[0].mxu0
      %v331 = vpop.f32.mrb[0].mxu0
      %v332 = vadd.f32 0.0, %v331
      %v333 = vpop.f32.mrb[0].mxu0
      %334 = vdwg.mxu0
      %vm335 = vcmp.eq.s32.totalorder %v247, 0
      %vm336 = vcmp.eq.s32.totalorder %v248, 0
      %v337 = vrot.slane %v329, 7
      %v338 = vrot.slane %v332, 7
      %vm339 = vcmp.lt.s32.totalorder %v247, 1
      %v340 = vsel %vm339, %v337, %v338
      %v341 = vsel %vm339, %v338, %v337
      %v342 = vsel %vm335, 0.0, %v341
      %v343 = vsel %vm336, 0.0, %v340
      %v352 = vunpack.c.l.b16 %v250
      %v353 = vunpack.c.l.b16 %v251
      %v354 = vunpack.c.l.b16 %v252
      %v355 = vunpack.c.l.b16 %v253
      %v356 = vunpack.c.l.b16 %v254
      %v357 = vunpack.c.l.b16 %v255
      %v358 = vunpack.c.l.b16 %v256
      %v359 = vunpack.c.l.b16 %v257
      %v360 = vpack.c.b16 %v353, %v352
      %v361 = vpack.c.b16 %v355, %v354
      %v362 = vpack.c.b16 %v357, %v356
      %v363 = vpack.c.b16 %v359, %v358
      %368 = vmatprep.subr.bf16.mxu0 0
      %369 = vmatpush1.bf16.msra.mxu0 %v360
      %370 = vmatprep.subr.bf16.mxu0 0
      %371 = vmatpush1.bf16.msra.mxu0 %v361
      %372 = vmatprep.subr.bf16.mxu0 0
      %373 = vmatpush1.bf16.msra.mxu0 %v362
      %374 = vmatprep.subr.bf16.mxu0 0
      %375 = vmatpush1.bf16.msra.mxu0 %v363
      %376 = vmatprep.subr.bf16.mxu0 0
      %377 = vmatpush1.bf16.msra.mxu0 0
      %378 = vmatprep.subr.bf16.mxu0 0
      %379 = vmatpush1.bf16.msra.mxu0 0
      %380 = vmatprep.subr.bf16.mxu0 0
      %381 = vmatpush1.bf16.msra.mxu0 0
      %382 = vmatprep.subr.bf16.mxu0 0
      %383 = vmatpush1.bf16.msra.mxu0 0
      %384 = vmatprep.subr.bf16.mxu0 0
      %385 = vmatpush1.bf16.msra.mxu0 0
      %386 = vmatprep.subr.bf16.mxu0 0
      %387 = vmatpush1.bf16.msra.mxu0 0
      %388 = vmatprep.subr.bf16.mxu0 0
      %389 = vmatpush1.bf16.msra.mxu0 0
      %390 = vmatprep.subr.bf16.mxu0 0
      %391 = vmatpush1.bf16.msra.mxu0 0
      %392 = vmatprep.subr.bf16.mxu0 0
      %393 = vmatpush1.bf16.msra.mxu0 0
      %394 = vmatprep.subr.bf16.mxu0 0
      %395 = vmatpush1.bf16.msra.mxu0 0
      %396 = vmatprep.subr.bf16.mxu0 0
      %397 = vmatpush1.bf16.msra.mxu0 0
      %398 = vmatprep.subr.bf16.mxu0 0
      %399 = vmatpush1.bf16.msra.mxu0 0
      %400 = vmatprep.mubr.bf16.mxu0 0
      %401 = vmatmul.mubr.bf16.gmra.mrb[0].mxu0 %v292
      %v402 = vpop.f32.mrb[0].mxu0
      %v403 = vadd.f32 %v342, %v402
      %v404 = vpop.f32.mrb[0].mxu0
      %v405 = vpop.f32.mrb[0].mxu0
      %v406 = vadd.f32 %v343, %v405
      %v407 = vpop.f32.mrb[0].mxu0
      %408 = vdwg.mxu0
      %s409 = scalar_lea.vmem %s1, 64
      %v410 = vld [vmem:[%s409] sm:$0xf]
      %v411 = vld [vmem:[%s409 + $0x4] sm:$0xf]
      %v412 = vld [vmem:[%s409 + $0x8] sm:$0xf]
      %v413 = vld [vmem:[%s409 + $0xc] sm:$0xf]
      %v414 = vld [vmem:[%s409 + $0x10] sm:$0xf]
      %v415 = vld [vmem:[%s409 + $0x14] sm:$0xf]
      %v416 = vld [vmem:[%s409 + $0x18] sm:$0xf]
      %v417 = vld [vmem:[%s409 + $0x1c] sm:$0xf]
      %v426 = vunpack.c.l.b16 %v410
      %v427 = vunpack.c.l.b16 %v411
      %v428 = vunpack.c.l.b16 %v412
      %v429 = vunpack.c.l.b16 %v413
      %v430 = vunpack.c.l.b16 %v414
      %v431 = vunpack.c.l.b16 %v415
      %v432 = vunpack.c.l.b16 %v416
      %v433 = vunpack.c.l.b16 %v417
      %v434 = vpack.c.b16 %v427, %v426
      %v435 = vpack.c.b16 %v429, %v428
      %v436 = vpack.c.b16 %v431, %v430
      %v437 = vpack.c.b16 %v433, %v432
      %442 = vmatprep.subr.bf16.mxu0 0
      %443 = vmatpush1.bf16.msra.mxu0 %v434
      %444 = vmatprep.subr.bf16.mxu0 0
      %445 = vmatpush1.bf16.msra.mxu0 %v435
      %446 = vmatprep.subr.bf16.mxu0 0
      %447 = vmatpush1.bf16.msra.mxu0 %v436
      %448 = vmatprep.subr.bf16.mxu0 0
      %449 = vmatpush1.bf16.msra.mxu0 %v437
      %450 = vmatprep.subr.bf16.mxu0 0
      %451 = vmatpush1.bf16.msra.mxu0 0
      %452 = vmatprep.subr.bf16.mxu0 0
      %453 = vmatpush1.bf16.msra.mxu0 0
      %454 = vmatprep.subr.bf16.mxu0 0
      %455 = vmatpush1.bf16.msra.mxu0 0
      %456 = vmatprep.subr.bf16.mxu0 0
      %457 = vmatpush1.bf16.msra.mxu0 0
      %458 = vmatprep.subr.bf16.mxu0 0
      %459 = vmatpush1.bf16.msra.mxu0 0
      %460 = vmatprep.subr.bf16.mxu0 0
      %461 = vmatpush1.bf16.msra.mxu0 0
      %462 = vmatprep.subr.bf16.mxu0 0
      %463 = vmatpush1.bf16.msra.mxu0 0
      %464 = vmatprep.subr.bf16.mxu0 0
      %465 = vmatpush1.bf16.msra.mxu0 0
      %466 = vmatprep.subr.bf16.mxu0 0
      %467 = vmatpush1.bf16.msra.mxu0 0
      %468 = vmatprep.subr.bf16.mxu0 0
      %469 = vmatpush1.bf16.msra.mxu0 0
      %470 = vmatprep.subr.bf16.mxu0 0
      %471 = vmatpush1.bf16.msra.mxu0 0
      %472 = vmatprep.subr.bf16.mxu0 0
      %473 = vmatpush1.bf16.msra.mxu0 0
      %474 = vmatprep.mubr.bf16.mxu0 0
      %475 = vmatmul.mubr.bf16.gmra.mrb[0].mxu0 %v292
      %v476 = vpop.f32.mrb[0].mxu0
      %v477 = vadd.f32 0.0, %v476
      %v478 = vpop.f32.mrb[0].mxu0
      %v479 = vpop.f32.mrb[0].mxu0
      %v480 = vadd.f32 0.0, %v479
      %v481 = vpop.f32.mrb[0].mxu0
      %482 = vdwg.mxu0
      %vm483 = vcmp.eq.s32.totalorder %v247, 15
      %vm484 = vcmp.eq.s32.totalorder %v248, 15
      %v485 = vrot.slane %v477, 1
      %v486 = vrot.slane %v480, 1
      %vm487 = vcmp.lt.s32.totalorder %v247, 7
      %v488 = vsel %vm487, %v485, %v486
      %v489 = vsel %vm487, %v486, %v485
      %v490 = vsel %vm483, 0.0, %v488
      %v491 = vsel %vm484, 0.0, %v489
      %v492 = vadd.f32 %v403, %v490
      %v493 = vadd.f32 %v406, %v491
      %v494 = vld [vmem:[%s2] sm:$0x1]
      %v496 = vlaneseq
      %v497 = vshrl.u32 %v496, 7
      %v498 = vsub.s32 0, %v497
      %v499 = vrot.slane %v494, %v498
      %v501 = vadd.f32 %v492, %v499
      %v502 = vadd.f32 %v493, %v499
      %v503 = vtanh.pop %v501
      %v504 = vtanh.pop %v502
      %v505 = vpack.c.bf16 %v504, %v503
      %v507 = vunpack.c.l.b16 %v505
      %v508 = vunpack.c.h.b16 %v505
      %v509 = vpack.c.b16 %v507, %v507
      %v510 = vpack.c.b16 %v508, %v508
      %513 = vst [vmem:[%s235] sm:$0xf] %v509
      %514 = vst [vmem:[%s235 + $0x4] sm:$0xf] %v510
      %v515 = vadd.f32 %v503, %v504
      %v516 = vrot.slane %v515, 4
      %v517 = vadd.f32 %v515, %v516
      %v518 = vrot.slane %v517, 2
      %v519 = vadd.f32 %v517, %v518
      %v520 = vrot.slane %v519, 1
      %v521 = vadd.f32 %v519, %v520
      %522 = vst [vmem:[%s238] sm:$0x1] %v521
      %v523 = vmul.f32 %v503, %v503
      %v524 = vmul.f32 %v504, %v504
      %v525 = vadd.f32 %v523, %v524
      %v526 = vrot.slane %v525, 4
      %v527 = vadd.f32 %v525, %v526
      %v528 = vrot.slane %v527, 2
      %v529 = vadd.f32 %v527, %v528
      %v530 = vrot.slane %v529, 1
      %v531 = vadd.f32 %v529, %v530
      %532 = vst [vmem:[%s241] sm:$0x1] %v531
      %p533 = scmp.lt.s32.totalorder %s17, 1
      %s534 = scalar_select %p533, %s17, 1
      %s535 = smul.addr %s534, 2
      %s536 = smul.addr %s535, 4
      %s537 = scalar_lea.vmem %s3, %s536
      %p538 = scmp.lt.s32.totalorder %s17, 1
      %s539 = scalar_select %p538, %s17, 1
      %s540 = scalar_lea.vmem %s4, %s539
      %p541 = scmp.lt.s32.totalorder %s17, 1
      %s542 = scalar_select %p541, %s17, 1
      %s543 = scalar_lea.vmem %s5, %s542
      // Predicated region
      $region33: #{residual_layer_pallas.2} parent=31 // pred_check
        %p544 = pneg %p103
      $region34: #{residual_layer_pallas.2} parent=31 // pred_check_branch
        %546 = sbr.rel (%p544) target = $region36
      $region35: #{residual_layer_pallas.2} parent=31 // pred_region
        _
      $region36: #{residual_layer_pallas.2} parent=31 // pred_fallthru
        _
      // Predicated region
      $region37: #{residual_layer_pallas.2} parent=31 // pred_check
        %p547 = pneg %p129
      $region38: #{residual_layer_pallas.2} parent=31 // pred_check_branch
        %549 = sbr.rel (%p547) target = $region40
      $region39: #{residual_layer_pallas.2} parent=31 // pred_region
        _
      $region40: #{residual_layer_pallas.2} parent=31 // pred_fallthru
        _
      // Predicated region
      $region41: #{residual_layer_pallas.2} parent=31 // pred_check
        %p550 = pneg %p155
      $region42: #{residual_layer_pallas.2} parent=31 // pred_check_branch
        %552 = sbr.rel (%p550) target = $region44
      $region43: #{residual_layer_pallas.2} parent=31 // pred_region
        _
      $region44: #{residual_layer_pallas.2} parent=31 // pred_fallthru
        _
    $region32: #{residual_layer_pallas.2} parent=5 // pred_fallthru
      _
    %p553 = scmp.le.s32.totalorder 2, %s12
    // Predicated region
    $region45: #{residual_layer_pallas.2} parent=5 // pred_check
      %p554 = pneg %p553
    $region46: #{residual_layer_pallas.2} parent=5 // pred_check_branch
      %556 = sbr.rel (%p554) target = $region48
    $region47: #{residual_layer_pallas.2} parent=5 // pred_region
      %s557 = ssub.s32 %s12, 2
      // Predicated region
      $region49: #{residual_layer_pallas.2} parent=47 // pred_check
        %p558 = pneg %p109
      $region50: #{residual_layer_pallas.2} parent=47 // pred_check_branch
        %560 = sbr.rel (%p558) target = $region52
      $region51: #{residual_layer_pallas.2} parent=47 // pred_region
        %p561 = scmp.lt.s32.totalorder %s18, 1
        %s562 = scalar_select %p561, %s18, 1
        %s563 = smul.addr %s562, 2
        %s564 = smul.addr %s563, 4
        %s565 = scalar_lea.vmem %s3, %s564
      $region52: #{residual_layer_pallas.2} parent=47 // pred_fallthru
        _
      // Predicated region
      $region53: #{residual_layer_pallas.2} parent=47 // pred_check
        %p566 = pneg %p135
      $region54: #{residual_layer_pallas.2} parent=47 // pred_check_branch
        %568 = sbr.rel (%p566) target = $region56
      $region55: #{residual_layer_pallas.2} parent=47 // pred_region
        %p569 = scmp.lt.s32.totalorder %s18, 1
        %s570 = scalar_select %p569, %s18, 1
        %s571 = scalar_lea.vmem %s4, %s570
      $region56: #{residual_layer_pallas.2} parent=47 // pred_fallthru
        _
      // Predicated region
      $region57: #{residual_layer_pallas.2} parent=47 // pred_check
        %p572 = pneg %p161
      $region58: #{residual_layer_pallas.2} parent=47 // pred_check_branch
        %574 = sbr.rel (%p572) target = $region60
      $region59: #{residual_layer_pallas.2} parent=47 // pred_region
        %p575 = scmp.lt.s32.totalorder %s18, 1
        %s576 = scalar_select %p575, %s18, 1
        %s577 = scalar_lea.vmem %s5, %s576
      $region60: #{residual_layer_pallas.2} parent=47 // pred_fallthru
        _
    $region48: #{residual_layer_pallas.2} parent=5 // pred_fallthru
      _
  $region6: #{residual_layer_pallas.2} parent=0 // loop_footer
    %s16 = sadd.s32 1, %s12
  $region7: #{residual_layer_pallas.2} parent=0 // loop_footer_branch
    %11 = sbr.rel target = $region3
  $region8: #{residual_layer_pallas.2} parent=0 // loop_exit
    _

// kernel: residual_layer_pallas.3
$region0: #{residual_layer_pallas.3}
  #allocation0 [shape = 'u32[]', space=smem, size = 0x4, offset = 0x4, fixed_abs, tag = 'smem constant byte address 0x4 - core index']
  #allocation1 [shape = 'u32[144,128]{1,0:T(1,128)}', space=vmem, size = 0x12000, scoped, tag = 'internal scratch']
  %s0 = inlined_call_operand.vmem [shape: bf16[2,16,128], index: 0, kind: input, shape index: {}]
  %s1 = inlined_call_operand.vmem [shape: f32[2,16,64], index: 1, kind: input, shape index: {}]
  %s2 = inlined_call_operand.vmem [shape: f32[1,128], index: 2, kind: input, shape index: {}]
  %s3 = inlined_call_operand.vmem [shape: f32[1,128], index: 3, kind: input, shape index: {}]
  %s4 = inlined_call_operand.vmem [shape: bf16[3,128,128], index: 4, kind: input, shape index: {}]
  %s5 = inlined_call_operand.vmem [shape: f32[1,128], index: 5, kind: input, shape index: {}]
  %s6 = inlined_call_operand.vmem [shape: f32[64,128], index: 6, kind: input, shape index: {}]
  %s7 = inlined_call_operand.vmem [shape: f32[1,128], index: 7, kind: input, shape index: {}]
  %s8 = inlined_call_operand.vmem [shape: f32[2,16,128], index: 8, kind: output, shape index: {}]
  %s9 = sld [smem:[#allocation0]]
  $region65: #{residual_layer_pallas.3} parent=0
    _
  %s11 = ssub.s32 1, %s9
  %s12 = scalar_select 0, %s11, %s9
  loop: start=0, step=1, limit=4
  $region2: #{residual_layer_pallas.3} parent=0 // loop_pre_header
    _
  $region3: #{residual_layer_pallas.3} parent=0 // loop_header
    %s14 = sphi 0, %s18
    %p15 = scmp.ge.s32.totalorder %s14, 4
    %s24 = sphi 0, %s26
    %s27 = sphi 0, %s24
    %s28 = sphi 0, %s27
    %s44 = sphi 0, %s28
    %s50 = sphi 0, %s52
    %s53 = sphi 0, %s50
    %s54 = sphi 0, %s53
    %s70 = sphi 0, %s54
    %s74 = sphi 0, %s74
    %s76 = sphi 0, %s74
    %s77 = sphi 0, %s76
    %s91 = sphi 0, %s77
    %s95 = sphi 0, %s95
    %s97 = sphi 0, %s95
    %s98 = sphi 0, %s97
    %s112 = sphi 0, %s98
    %s116 = sphi 0, %s116
    %s118 = sphi 0, %s116
    %s119 = sphi 0, %s118
    %s133 = sphi 0, %s119
    %s137 = sphi 0, %s137
    %s139 = sphi 0, %s137
    %s140 = sphi 0, %s139
    %s154 = sphi 0, %s140
    %s158 = sphi 0, %s158
    %s160 = sphi 0, %s158
    %s161 = sphi 0, %s160
    %s175 = sphi 0, %s161
    %s179 = sphi 0, %s179
    %s181 = sphi 0, %s179
    %s182 = sphi 0, %s181
    %s196 = sphi 0, %s182
    %s202 = sphi 0, %s204
    %s205 = sphi 0, %s202
    %s206 = sphi 0, %s205
    %s222 = sphi 0, %s206
  $region4: #{residual_layer_pallas.3} parent=0 // loop_header_branch
    %17 = sbr.rel (%p15) target = $region8
  $region5: #{residual_layer_pallas.3} parent=0 // loop_body
    %s19 = ssub.s32 %s14, 1
    %s20 = ssub.s32 %s14, 2
    %s21 = sadd.s32 %s14, 1
    %s22 = ssub.s32 %s14, %s21
    %p23 = scmp.eq.s32.totalorder %s22, 0
    %s25 = sadd.s32 %s24, 1
    %s26 = scalar_select %p23, %s24, %s25
    %p29 = pneg %p23
    %p30 = scmp.eq.s32.totalorder %s14, 1
    %p31 = por %p29, %p30
    %p32 = scmp.ne.s32.totalorder %s24, %s27
    %p33 = scmp.eq.s32.totalorder %s14, 0
    %p34 = por %p32, %p33
    %p35 = scmp.ne.s32.totalorder %s24, %s27
    %p36 = scmp.eq.s32.totalorder %s19, 1
    %p37 = por %p35, %p36
    %p38 = scmp.ne.s32.totalorder %s27, %s28
    %p39 = scmp.eq.s32.totalorder %s19, 0
    %p40 = por %p38, %p39
    %p41 = scmp.ne.s32.totalorder %s27, %s28
    %p42 = scmp.eq.s32.totalorder %s20, 1
    %p43 = por %p41, %p42
    %p45 = scmp.ne.s32.totalorder %s28, %s44
    %p46 = scmp.eq.s32.totalorder %s20, 0
    %p47 = por %p45, %p46
    %s48 = ssub.s32 %s14, %s21
    %p49 = scmp.eq.s32.totalorder %s48, 0
    %s51 = sadd.s32 %s50, 1
    %s52 = scalar_select %p49, %s50, %s51
    %p55 = pneg %p49
    %p56 = scmp.eq.s32.totalorder %s14, 1
    %p57 = por %p55, %p56
    %p58 = scmp.ne.s32.totalorder %s50, %s53
    %p59 = scmp.eq.s32.totalorder %s14, 0
    %p60 = por %p58, %p59
    %p61 = scmp.ne.s32.totalorder %s50, %s53
    %p62 = scmp.eq.s32.totalorder %s19, 1
    %p63 = por %p61, %p62
    %p64 = scmp.ne.s32.totalorder %s53, %s54
    %p65 = scmp.eq.s32.totalorder %s19, 0
    %p66 = por %p64, %p65
    %p67 = scmp.ne.s32.totalorder %s53, %s54
    %p68 = scmp.eq.s32.totalorder %s20, 1
    %p69 = por %p67, %p68
    %p71 = scmp.ne.s32.totalorder %s54, %s70
    %p72 = scmp.eq.s32.totalorder %s20, 0
    %p73 = por %p71, %p72
    %s75 = sadd.s32 %s74, 1
    %p78 = scmp.eq.s32.totalorder %s14, 1
    %p79 = scmp.ne.s32.totalorder %s74, %s76
    %p80 = scmp.eq.s32.totalorder %s14, 0
    %p81 = por %p79, %p80
    %p82 = scmp.ne.s32.totalorder %s74, %s76
    %p83 = scmp.eq.s32.totalorder %s19, 1
    %p84 = por %p82, %p83
    %p85 = scmp.ne.s32.totalorder %s76, %s77
    %p86 = scmp.eq.s32.totalorder %s19, 0
    %p87 = por %p85, %p86
    %p88 = scmp.ne.s32.totalorder %s76, %s77
    %p89 = scmp.eq.s32.totalorder %s20, 1
    %p90 = por %p88, %p89
    %p92 = scmp.ne.s32.totalorder %s77, %s91
    %p93 = scmp.eq.s32.totalorder %s20, 0
    %p94 = por %p92, %p93
    %s96 = sadd.s32 %s95, 1
    %p99 = scmp.eq.s32.totalorder %s14, 1
    %p100 = scmp.ne.s32.totalorder %s95, %s97
    %p101 = scmp.eq.s32.totalorder %s14, 0
    %p102 = por %p100, %p101
    %p103 = scmp.ne.s32.totalorder %s95, %s97
    %p104 = scmp.eq.s32.totalorder %s19, 1
    %p105 = por %p103, %p104
    %p106 = scmp.ne.s32.totalorder %s97, %s98
    %p107 = scmp.eq.s32.totalorder %s19, 0
    %p108 = por %p106, %p107
    %p109 = scmp.ne.s32.totalorder %s97, %s98
    %p110 = scmp.eq.s32.totalorder %s20, 1
    %p111 = por %p109, %p110
    %p113 = scmp.ne.s32.totalorder %s98, %s112
    %p114 = scmp.eq.s32.totalorder %s20, 0
    %p115 = por %p113, %p114
    %s117 = sadd.s32 %s116, 1
    %p120 = scmp.eq.s32.totalorder %s14, 1
    %p121 = scmp.ne.s32.totalorder %s116, %s118
    %p122 = scmp.eq.s32.totalorder %s14, 0
    %p123 = por %p121, %p122
    %p124 = scmp.ne.s32.totalorder %s116, %s118
    %p125 = scmp.eq.s32.totalorder %s19, 1
    %p126 = por %p124, %p125
    %p127 = scmp.ne.s32.totalorder %s118, %s119
    %p128 = scmp.eq.s32.totalorder %s19, 0
    %p129 = por %p127, %p128
    %p130 = scmp.ne.s32.totalorder %s118, %s119
    %p131 = scmp.eq.s32.totalorder %s20, 1
    %p132 = por %p130, %p131
    %p134 = scmp.ne.s32.totalorder %s119, %s133
    %p135 = scmp.eq.s32.totalorder %s20, 0
    %p136 = por %p134, %p135
    %s138 = sadd.s32 %s137, 1
    %p141 = scmp.eq.s32.totalorder %s14, 1
    %p142 = scmp.ne.s32.totalorder %s137, %s139
    %p143 = scmp.eq.s32.totalorder %s14, 0
    %p144 = por %p142, %p143
    %p145 = scmp.ne.s32.totalorder %s137, %s139
    %p146 = scmp.eq.s32.totalorder %s19, 1
    %p147 = por %p145, %p146
    %p148 = scmp.ne.s32.totalorder %s139, %s140
    %p149 = scmp.eq.s32.totalorder %s19, 0
    %p150 = por %p148, %p149
    %p151 = scmp.ne.s32.totalorder %s139, %s140
    %p152 = scmp.eq.s32.totalorder %s20, 1
    %p153 = por %p151, %p152
    %p155 = scmp.ne.s32.totalorder %s140, %s154
    %p156 = scmp.eq.s32.totalorder %s20, 0
    %p157 = por %p155, %p156
    %s159 = sadd.s32 %s158, 1
    %p162 = scmp.eq.s32.totalorder %s14, 1
    %p163 = scmp.ne.s32.totalorder %s158, %s160
    %p164 = scmp.eq.s32.totalorder %s14, 0
    %p165 = por %p163, %p164
    %p166 = scmp.ne.s32.totalorder %s158, %s160
    %p167 = scmp.eq.s32.totalorder %s19, 1
    %p168 = por %p166, %p167
    %p169 = scmp.ne.s32.totalorder %s160, %s161
    %p170 = scmp.eq.s32.totalorder %s19, 0
    %p171 = por %p169, %p170
    %p172 = scmp.ne.s32.totalorder %s160, %s161
    %p173 = scmp.eq.s32.totalorder %s20, 1
    %p174 = por %p172, %p173
    %p176 = scmp.ne.s32.totalorder %s161, %s175
    %p177 = scmp.eq.s32.totalorder %s20, 0
    %p178 = por %p176, %p177
    %s180 = sadd.s32 %s179, 1
    %p183 = scmp.eq.s32.totalorder %s14, 1
    %p184 = scmp.ne.s32.totalorder %s179, %s181
    %p185 = scmp.eq.s32.totalorder %s14, 0
    %p186 = por %p184, %p185
    %p187 = scmp.ne.s32.totalorder %s179, %s181
    %p188 = scmp.eq.s32.totalorder %s19, 1
    %p189 = por %p187, %p188
    %p190 = scmp.ne.s32.totalorder %s181, %s182
    %p191 = scmp.eq.s32.totalorder %s19, 0
    %p192 = por %p190, %p191
    %p193 = scmp.ne.s32.totalorder %s181, %s182
    %p194 = scmp.eq.s32.totalorder %s20, 1
    %p195 = por %p193, %p194
    %p197 = scmp.ne.s32.totalorder %s182, %s196
    %p198 = scmp.eq.s32.totalorder %s20, 0
    %p199 = por %p197, %p198
    %s200 = ssub.s32 %s14, %s21
    %p201 = scmp.eq.s32.totalorder %s200, 0
    %s203 = sadd.s32 %s202, 1
    %s204 = scalar_select %p201, %s202, %s203
    %p207 = pneg %p201
    %p208 = scmp.eq.s32.totalorder %s14, 1
    %p209 = por %p207, %p208
    %p210 = scmp.ne.s32.totalorder %s202, %s205
    %p211 = scmp.eq.s32.totalorder %s14, 0
    %p212 = por %p210, %p211
    %p213 = scmp.ne.s32.totalorder %s202, %s205
    %p214 = scmp.eq.s32.totalorder %s19, 1
    %p215 = por %p213, %p214
    %p216 = scmp.ne.s32.totalorder %s205, %s206
    %p217 = scmp.eq.s32.totalorder %s19, 0
    %p218 = por %p216, %p217
    %p219 = scmp.ne.s32.totalorder %s205, %s206
    %p220 = scmp.eq.s32.totalorder %s20, 1
    %p221 = por %p219, %p220
    %p223 = scmp.ne.s32.totalorder %s206, %s222
    %p224 = scmp.eq.s32.totalorder %s20, 0
    %p225 = por %p223, %p224
    %p226 = scmp.le.s32.totalorder 1, %s14
    %p227 = scmp.lt.s32.totalorder %s14, 3
    %p228 = pnand %p226, %p227
    %p229 = pneg %p228
    // Predicated region
    $region9: #{residual_layer_pallas.3} parent=5 // pred_check
      _
    $region10: #{residual_layer_pallas.3} parent=5 // pred_check_branch
      %231 = sbr.rel (%p228) target = $region12
    $region11: #{residual_layer_pallas.3} parent=5 // pred_region
      %s232 = ssub.s32 %s14, 1
      // Predicated region
      $region13: #{residual_layer_pallas.3} parent=11 // pred_check
        %p233 = pneg %p87
      $region14: #{residual_layer_pallas.3} parent=11 // pred_check_branch
        %235 = sbr.rel (%p233) target = $region16
      $region15: #{residual_layer_pallas.3} parent=11 // pred_region
        _
      $region16: #{residual_layer_pallas.3} parent=11 // pred_fallthru
        _
      // Predicated region
      $region17: #{residual_layer_pallas.3} parent=11 // pred_check
        %p236 = pneg %p108
      $region18: #{residual_layer_pallas.3} parent=11 // pred_check_branch
        %238 = sbr.rel (%p236) target = $region20
      $region19: #{residual_layer_pallas.3} parent=11 // pred_region
        _
      $region20: #{residual_layer_pallas.3} parent=11 // pred_fallthru
        _
      // Predicated region
      $region21: #{residual_layer_pallas.3} parent=11 // pred_check
        %p239 = pneg %p129
      $region22: #{residual_layer_pallas.3} parent=11 // pred_check_branch
        %241 = sbr.rel (%p239) target = $region24
      $region23: #{residual_layer_pallas.3} parent=11 // pred_region
        _
      $region24: #{residual_layer_pallas.3} parent=11 // pred_fallthru
        _
      // Predicated region
      $region25: #{residual_layer_pallas.3} parent=11 // pred_check
        %p242 = pneg %p150
      $region26: #{residual_layer_pallas.3} parent=11 // pred_check_branch
        %244 = sbr.rel (%p242) target = $region28
      $region27: #{residual_layer_pallas.3} parent=11 // pred_region
        _
      $region28: #{residual_layer_pallas.3} parent=11 // pred_fallthru
        _
      // Predicated region
      $region29: #{residual_layer_pallas.3} parent=11 // pred_check
        %p245 = pneg %p171
      $region30: #{residual_layer_pallas.3} parent=11 // pred_check_branch
        %247 = sbr.rel (%p245) target = $region32
      $region31: #{residual_layer_pallas.3} parent=11 // pred_region
        _
      $region32: #{residual_layer_pallas.3} parent=11 // pred_fallthru
        _
      // Predicated region
      $region33: #{residual_layer_pallas.3} parent=11 // pred_check
        %p248 = pneg %p192
      $region34: #{residual_layer_pallas.3} parent=11 // pred_check_branch
        %250 = sbr.rel (%p248) target = $region36
      $region35: #{residual_layer_pallas.3} parent=11 // pred_region
        _
      $region36: #{residual_layer_pallas.3} parent=11 // pred_fallthru
        _
    $region12: #{residual_layer_pallas.3} parent=5 // pred_fallthru
      _
    %p251 = scmp.lt.s32.totalorder %s14, 2
    // Predicated region
    $region37: #{residual_layer_pallas.3} parent=5 // pred_check
      %p252 = pneg %p251
    $region38: #{residual_layer_pallas.3} parent=5 // pred_check_branch
      %254 = sbr.rel (%p252) target = $region40
    $region39: #{residual_layer_pallas.3} parent=5 // pred_region
      // Predicated region
      $region41: #{residual_layer_pallas.3} parent=39 // pred_check
        %p255 = pneg %p34
      $region42: #{residual_layer_pallas.3} parent=39 // pred_check_branch
        %257 = sbr.rel (%p255) target = $region44
      $region43: #{residual_layer_pallas.3} parent=39 // pred_region
        %p258 = scmp.lt.s32.totalorder %s14, 1
        %s259 = scalar_select %p258, %s14, 1
        %s260 = smul.addr %s259, 2
        %s261 = smul.addr %s260, 4
        %s262 = scalar_lea.vmem %s0, %s261
      $region44: #{residual_layer_pallas.3} parent=39 // pred_fallthru
        _
      // Predicated region
      $region45: #{residual_layer_pallas.3} parent=39 // pred_check
        %p263 = pneg %p60
      $region46: #{residual_layer_pallas.3} parent=39 // pred_check_branch
        %265 = sbr.rel (%p263) target = $region48
      $region47: #{residual_layer_pallas.3} parent=39 // pred_region
        %p266 = scmp.lt.s32.totalorder %s14, 1
        %s267 = scalar_select %p266, %s14, 1
        %s268 = smul.addr %s267, 2
        %s269 = smul.addr %s268, 8
        %s270 = scalar_lea.vmem %s1, %s269
      $region48: #{residual_layer_pallas.3} parent=39 // pred_fallthru
        _
    $region40: #{residual_layer_pallas.3} parent=5 // pred_fallthru
      _
    %p271 = scmp.le.s32.totalorder 1, %s14
    %p272 = scmp.lt.s32.totalorder %s14, 3
    %p273 = pnand %p271, %p272
    %p274 = pneg %p273
    // Predicated region
    $region49: #{residual_layer_pallas.3} parent=5 // pred_check
      _
    $region50: #{residual_layer_pallas.3} parent=5 // pred_check_branch
      %276 = sbr.rel (%p273) target = $region52
    $region51: #{residual_layer_pallas.3} parent=5 // pred_region
      %s277 = ssub.s32 %s14, 1
      %p278 = scmp.lt.s32.totalorder %s19, 1
      %s279 = scalar_select %p278, %s19, 1
      %s280 = smul.addr %s279, 2
      %s281 = smul.addr %s280, 4
      %s282 = scalar_lea.vmem %s0, %s281
      %p283 = pneg %p40
      %p284 = pneg %p37
      %p285 = scmp.lt.s32.totalorder %s19, 1
      %s286 = scalar_select %p285, %s19, 1
      %s287 = smul.addr %s286, 2
      %s288 = smul.addr %s287, 8
      %s289 = scalar_lea.vmem %s1, %s288
      %p290 = pneg %p66
      %p291 = pneg %p63
      %p292 = pneg %p87
      %p293 = pneg %p84
      %p294 = pneg %p108
      %p295 = pneg %p105
      %p296 = pneg %p129
      %p297 = pneg %p126
      %p298 = pneg %p150
      %p299 = pneg %p147
      %p300 = pneg %p171
      %p301 = pneg %p168
      %p302 = pneg %p192
      %p303 = pneg %p189
      %p304 = pneg %p218
      %p305 = pneg %p215
      %p306 = scmp.lt.s32.totalorder %s19, 1
      %s307 = scalar_select %p306, %s19, 1
      %s308 = smul.addr %s307, 2
      %s309 = smul.addr %s308, 8
      %s310 = scalar_lea.vmem %s8, %s309
      %p311 = scmp.lt.s32.totalorder %s19, 1
      %s312 = scalar_select %p311, %s19, 1
      %s313 = smul.addr %s312, 2
      %s314 = smul.addr %s313, 4
      %s315 = scalar_lea.vmem %s0, %s314
      %p316 = scmp.lt.s32.totalorder %s19, 1
      %s317 = scalar_select %p316, %s19, 1
      %s318 = smul.addr %s317, 2
      %s319 = smul.addr %s318, 8
      %s320 = scalar_lea.vmem %s1, %s319
      %p321 = scmp.lt.s32.totalorder %s19, 1
      %s322 = scalar_select %p321, %s19, 1
      %s323 = smul.addr %s322, 2
      %s324 = smul.addr %s323, 8
      %s325 = scalar_lea.vmem %s8, %s324
      %v327 = vld [vmem:[%s315] sm:$0xf]
      %v328 = vld [vmem:[%s315 + $0x4] sm:$0xf]
      %v329 = vunpack.c.l.bf16 %v327
      %v330 = vunpack.c.l.bf16 %v328
      %v331 = vld [vmem:[%s2] sm:$0x1]
      %v333 = vlaneseq
      %v334 = vshrl.u32 %v333, 7
      %v335 = vsub.s32 0, %v334
      %v336 = vrot.slane %v331, %v335
      %v338 = vmul.f32 %v329, %v336
      %v339 = vmul.f32 %v330, %v336
      %v340 = vld [vmem:[%s3] sm:$0x1]
      %v342 = vlaneseq
      %v343 = vshrl.u32 %v342, 7
      %v344 = vsub.s32 0, %v343
      %v345 = vrot.slane %v340, %v344
      %v347 = vadd.f32 %v338, %v345
      %v348 = vadd.f32 %v339, %v345
      %v349 = vpack.c.bf16 %v348, %v347
      %v350 = vlaneseq
      %v351 = vshrl.u32 %v350, 7
      %v352 = vadd.s32 %v351, 8
      %s353 = scalar_lea.vmem %s4, 64
      %v354 = vld [vmem:[%s353] sm:$0xf]
      %v355 = vld [vmem:[%s353 + $0x4] sm:$0xf]
      %v356 = vld [vmem:[%s353 + $0x8] sm:$0xf]
      %v357 = vld [vmem:[%s353 + $0xc] sm:$0xf]
      %v358 = vld [vmem:[%s353 + $0x10] sm:$0xf]
      %v359 = vld [vmem:[%s353 + $0x14] sm:$0xf]
      %v360 = vld [vmem:[%s353 + $0x18] sm:$0xf]
      %v361 = vld [vmem:[%s353 + $0x1c] sm:$0xf]
      %v362 = vld [vmem:[%s353 + $0x20] sm:$0xf]
      %v363 = vld [vmem:[%s353 + $0x24] sm:$0xf]
      %v364 = vld [vmem:[%s353 + $0x28] sm:$0xf]
      %v365 = vld [vmem:[%s353 + $0x2c] sm:$0xf]
      %v366 = vld [vmem:[%s353 + $0x30] sm:$0xf]
      %v367 = vld [vmem:[%s353 + $0x34] sm:$0xf]
      %v368 = vld [vmem:[%s353 + $0x38] sm:$0xf]
      %v369 = vld [vmem:[%s353 + $0x3c] sm:$0xf]
      %v370 = vld [vmem:[%s4] sm:$0xf]
      %v371 = vld [vmem:[%s4 + $0x4] sm:$0xf]
      %v372 = vld [vmem:[%s4 + $0x8] sm:$0xf]
      %v373 = vld [vmem:[%s4 + $0xc] sm:$0xf]
      %v374 = vld [vmem:[%s4 + $0x10] sm:$0xf]
      %v375 = vld [vmem:[%s4 + $0x14] sm:$0xf]
      %v376 = vld [vmem:[%s4 + $0x18] sm:$0xf]
      %v377 = vld [vmem:[%s4 + $0x1c] sm:$0xf]
      %v378 = vld [vmem:[%s4 + $0x20] sm:$0xf]
      %v379 = vld [vmem:[%s4 + $0x24] sm:$0xf]
      %v380 = vld [vmem:[%s4 + $0x28] sm:$0xf]
      %v381 = vld [vmem:[%s4 + $0x2c] sm:$0xf]
      %v382 = vld [vmem:[%s4 + $0x30] sm:$0xf]
      %v383 = vld [vmem:[%s4 + $0x34] sm:$0xf]
      %v384 = vld [vmem:[%s4 + $0x38] sm:$0xf]
      %v385 = vld [vmem:[%s4 + $0x3c] sm:$0xf]
      %v402 = vunpack.c.l.b16 %v370
      %v403 = vunpack.c.l.b16 %v371
      %v404 = vunpack.c.l.b16 %v372
      %v405 = vunpack.c.l.b16 %v373
      %v406 = vunpack.c.l.b16 %v374
      %v407 = vunpack.c.l.b16 %v375
      %v408 = vunpack.c.l.b16 %v376
      %v409 = vunpack.c.l.b16 %v377
      %v410 = vunpack.c.l.b16 %v378
      %v411 = vunpack.c.l.b16 %v379
      %v412 = vunpack.c.l.b16 %v380
      %v413 = vunpack.c.l.b16 %v381
      %v414 = vunpack.c.l.b16 %v382
      %v415 = vunpack.c.l.b16 %v383
      %v416 = vunpack.c.l.b16 %v384
      %v417 = vunpack.c.l.b16 %v385
      %v418 = vpack.c.b16 %v403, %v402
      %v419 = vpack.c.b16 %v405, %v404
      %v420 = vpack.c.b16 %v407, %v406
      %v421 = vpack.c.b16 %v409, %v408
      %v422 = vpack.c.b16 %v411, %v410
      %v423 = vpack.c.b16 %v413, %v412
      %v424 = vpack.c.b16 %v415, %v414
      %v425 = vpack.c.b16 %v417, %v416
      %434 = vmatprep.subr.bf16.mxu0 0
      %435 = vmatpush1.bf16.msra.mxu0 %v418
      %436 = vmatprep.subr.bf16.mxu0 0
      %437 = vmatpush1.bf16.msra.mxu0 %v419
      %438 = vmatprep.subr.bf16.mxu0 0
      %439 = vmatpush1.bf16.msra.mxu0 %v420
      %440 = vmatprep.subr.bf16.mxu0 0
      %441 = vmatpush1.bf16.msra.mxu0 %v421
      %442 = vmatprep.subr.bf16.mxu0 0
      %443 = vmatpush1.bf16.msra.mxu0 %v422
      %444 = vmatprep.subr.bf16.mxu0 0
      %445 = vmatpush1.bf16.msra.mxu0 %v423
      %446 = vmatprep.subr.bf16.mxu0 0
      %447 = vmatpush1.bf16.msra.mxu0 %v424
      %448 = vmatprep.subr.bf16.mxu0 0
      %449 = vmatpush1.bf16.msra.mxu0 %v425
      %450 = vmatprep.subr.bf16.mxu0 0
      %451 = vmatpush1.bf16.msra.mxu0 0
      %452 = vmatprep.subr.bf16.mxu0 0
      %453 = vmatpush1.bf16.msra.mxu0 0
      %454 = vmatprep.subr.bf16.mxu0 0
      %455 = vmatpush1.bf16.msra.mxu0 0
      %456 = vmatprep.subr.bf16.mxu0 0
      %457 = vmatpush1.bf16.msra.mxu0 0
      %458 = vmatprep.subr.bf16.mxu0 0
      %459 = vmatpush1.bf16.msra.mxu0 0
      %460 = vmatprep.subr.bf16.mxu0 0
      %461 = vmatpush1.bf16.msra.mxu0 0
      %462 = vmatprep.subr.bf16.mxu0 0
      %463 = vmatpush1.bf16.msra.mxu0 0
      %464 = vmatprep.subr.bf16.mxu0 0
      %465 = vmatpush1.bf16.msra.mxu0 0
      %466 = vmatprep.mubr.bf16.mxu0 0
      %467 = vmatmul.mubr.bf16.gmra.mrb[0].mxu0 %v349
      %v468 = vpop.f32.mrb[0].mxu0
      %v469 = vadd.f32 0.0, %v468
      %v470 = vpop.f32.mrb[0].mxu0
      %v471 = vpop.f32.mrb[0].mxu0
      %v472 = vadd.f32 0.0, %v471
      %v473 = vpop.f32.mrb[0].mxu0
      %474 = vdwg.mxu0
      %vm475 = vcmp.eq.s32.totalorder %v351, 0
      %vm476 = vcmp.eq.s32.totalorder %v352, 0
      %v477 = vrot.slane %v469, 7
      %v478 = vrot.slane %v472, 7
      %vm479 = vcmp.lt.s32.totalorder %v351, 1
      %v480 = vsel %vm479, %v477, %v478
      %v481 = vsel %vm479, %v478, %v477
      %v482 = vsel %vm475, 0.0, %v481
      %v483 = vsel %vm476, 0.0, %v480
      %v500 = vunpack.c.l.b16 %v354
      %v501 = vunpack.c.l.b16 %v355
      %v502 = vunpack.c.l.b16 %v356
      %v503 = vunpack.c.l.b16 %v357
      %v504 = vunpack.c.l.b16 %v358
      %v505 = vunpack.c.l.b16 %v359
      %v506 = vunpack.c.l.b16 %v360
      %v507 = vunpack.c.l.b16 %v361
      %v508 = vunpack.c.l.b16 %v362
      %v509 = vunpack.c.l.b16 %v363
      %v510 = vunpack.c.l.b16 %v364
      %v511 = vunpack.c.l.b16 %v365
      %v512 = vunpack.c.l.b16 %v366
      %v513 = vunpack.c.l.b16 %v367
      %v514 = vunpack.c.l.b16 %v368
      %v515 = vunpack.c.l.b16 %v369
      %v516 = vpack.c.b16 %v501, %v500
      %v517 = vpack.c.b16 %v503, %v502
      %v518 = vpack.c.b16 %v505, %v504
      %v519 = vpack.c.b16 %v507, %v506
      %v520 = vpack.c.b16 %v509, %v508
      %v521 = vpack.c.b16 %v511, %v510
      %v522 = vpack.c.b16 %v513, %v512
      %v523 = vpack.c.b16 %v515, %v514
      %532 = vmatprep.subr.bf16.mxu0 0
      %533 = vmatpush1.bf16.msra.mxu0 %v516
      %534 = vmatprep.subr.bf16.mxu0 0
      %535 = vmatpush1.bf16.msra.mxu0 %v517
      %536 = vmatprep.subr.bf16.mxu0 0
      %537 = vmatpush1.bf16.msra.mxu0 %v518
      %538 = vmatprep.subr.bf16.mxu0 0
      %539 = vmatpush1.bf16.msra.mxu0 %v519
      %540 = vmatprep.subr.bf16.mxu0 0
      %541 = vmatpush1.bf16.msra.mxu0 %v520
      %542 = vmatprep.subr.bf16.mxu0 0
      %543 = vmatpush1.bf16.msra.mxu0 %v521
      %544 = vmatprep.subr.bf16.mxu0 0
      %545 = vmatpush1.bf16.msra.mxu0 %v522
      %546 = vmatprep.subr.bf16.mxu0 0
      %547 = vmatpush1.bf16.msra.mxu0 %v523
      %548 = vmatprep.subr.bf16.mxu0 0
      %549 = vmatpush1.bf16.msra.mxu0 0
      %550 = vmatprep.subr.bf16.mxu0 0
      %551 = vmatpush1.bf16.msra.mxu0 0
      %552 = vmatprep.subr.bf16.mxu0 0
      %553 = vmatpush1.bf16.msra.mxu0 0
      %554 = vmatprep.subr.bf16.mxu0 0
      %555 = vmatpush1.bf16.msra.mxu0 0
      %556 = vmatprep.subr.bf16.mxu0 0
      %557 = vmatpush1.bf16.msra.mxu0 0
      %558 = vmatprep.subr.bf16.mxu0 0
      %559 = vmatpush1.bf16.msra.mxu0 0
      %560 = vmatprep.subr.bf16.mxu0 0
      %561 = vmatpush1.bf16.msra.mxu0 0
      %562 = vmatprep.subr.bf16.mxu0 0
      %563 = vmatpush1.bf16.msra.mxu0 0
      %564 = vmatprep.mubr.bf16.mxu0 0
      %565 = vmatmul.mubr.bf16.gmra.mrb[0].mxu0 %v349
      %v566 = vpop.f32.mrb[0].mxu0
      %v567 = vadd.f32 %v482, %v566
      %v568 = vpop.f32.mrb[0].mxu0
      %v569 = vpop.f32.mrb[0].mxu0
      %v570 = vadd.f32 %v483, %v569
      %v571 = vpop.f32.mrb[0].mxu0
      %572 = vdwg.mxu0
      %s573 = scalar_lea.vmem %s4, 128
      %v574 = vld [vmem:[%s573] sm:$0xf]
      %v575 = vld [vmem:[%s573 + $0x4] sm:$0xf]
      %v576 = vld [vmem:[%s573 + $0x8] sm:$0xf]
      %v577 = vld [vmem:[%s573 + $0xc] sm:$0xf]
      %v578 = vld [vmem:[%s573 + $0x10] sm:$0xf]
      %v579 = vld [vmem:[%s573 + $0x14] sm:$0xf]
      %v580 = vld [vmem:[%s573 + $0x18] sm:$0xf]
      %v581 = vld [vmem:[%s573 + $0x1c] sm:$0xf]
      %v582 = vld [vmem:[%s573 + $0x20] sm:$0xf]
      %v583 = vld [vmem:[%s573 + $0x24] sm:$0xf]
      %v584 = vld [vmem:[%s573 + $0x28] sm:$0xf]
      %v585 = vld [vmem:[%s573 + $0x2c] sm:$0xf]
      %v586 = vld [vmem:[%s573 + $0x30] sm:$0xf]
      %v587 = vld [vmem:[%s573 + $0x34] sm:$0xf]
      %v588 = vld [vmem:[%s573 + $0x38] sm:$0xf]
      %v589 = vld [vmem:[%s573 + $0x3c] sm:$0xf]
      %v606 = vunpack.c.l.b16 %v574
      %v607 = vunpack.c.l.b16 %v575
      %v608 = vunpack.c.l.b16 %v576
      %v609 = vunpack.c.l.b16 %v577
      %v610 = vunpack.c.l.b16 %v578
      %v611 = vunpack.c.l.b16 %v579
      %v612 = vunpack.c.l.b16 %v580
      %v613 = vunpack.c.l.b16 %v581
      %v614 = vunpack.c.l.b16 %v582
      %v615 = vunpack.c.l.b16 %v583
      %v616 = vunpack.c.l.b16 %v584
      %v617 = vunpack.c.l.b16 %v585
      %v618 = vunpack.c.l.b16 %v586
      %v619 = vunpack.c.l.b16 %v587
      %v620 = vunpack.c.l.b16 %v588
      %v621 = vunpack.c.l.b16 %v589
      %v622 = vpack.c.b16 %v607, %v606
      %v623 = vpack.c.b16 %v609, %v608
      %v624 = vpack.c.b16 %v611, %v610
      %v625 = vpack.c.b16 %v613, %v612
      %v626 = vpack.c.b16 %v615, %v614
      %v627 = vpack.c.b16 %v617, %v616
      %v628 = vpack.c.b16 %v619, %v618
      %v629 = vpack.c.b16 %v621, %v620
      %638 = vmatprep.subr.bf16.mxu0 0
      %639 = vmatpush1.bf16.msra.mxu0 %v622
      %640 = vmatprep.subr.bf16.mxu0 0
      %641 = vmatpush1.bf16.msra.mxu0 %v623
      %642 = vmatprep.subr.bf16.mxu0 0
      %643 = vmatpush1.bf16.msra.mxu0 %v624
      %644 = vmatprep.subr.bf16.mxu0 0
      %645 = vmatpush1.bf16.msra.mxu0 %v625
      %646 = vmatprep.subr.bf16.mxu0 0
      %647 = vmatpush1.bf16.msra.mxu0 %v626
      %648 = vmatprep.subr.bf16.mxu0 0
      %649 = vmatpush1.bf16.msra.mxu0 %v627
      %650 = vmatprep.subr.bf16.mxu0 0
      %651 = vmatpush1.bf16.msra.mxu0 %v628
      %652 = vmatprep.subr.bf16.mxu0 0
      %653 = vmatpush1.bf16.msra.mxu0 %v629
      %654 = vmatprep.subr.bf16.mxu0 0
      %655 = vmatpush1.bf16.msra.mxu0 0
      %656 = vmatprep.subr.bf16.mxu0 0
      %657 = vmatpush1.bf16.msra.mxu0 0
      %658 = vmatprep.subr.bf16.mxu0 0
      %659 = vmatpush1.bf16.msra.mxu0 0
      %660 = vmatprep.subr.bf16.mxu0 0
      %661 = vmatpush1.bf16.msra.mxu0 0
      %662 = vmatprep.subr.bf16.mxu0 0
      %663 = vmatpush1.bf16.msra.mxu0 0
      %664 = vmatprep.subr.bf16.mxu0 0
      %665 = vmatpush1.bf16.msra.mxu0 0
      %666 = vmatprep.subr.bf16.mxu0 0
      %667 = vmatpush1.bf16.msra.mxu0 0
      %668 = vmatprep.subr.bf16.mxu0 0
      %669 = vmatpush1.bf16.msra.mxu0 0
      %670 = vmatprep.mubr.bf16.mxu0 0
      %671 = vmatmul.mubr.bf16.gmra.mrb[0].mxu0 %v349
      %v672 = vpop.f32.mrb[0].mxu0
      %v673 = vadd.f32 0.0, %v672
      %v674 = vpop.f32.mrb[0].mxu0
      %v675 = vpop.f32.mrb[0].mxu0
      %v676 = vadd.f32 0.0, %v675
      %v677 = vpop.f32.mrb[0].mxu0
      %678 = vdwg.mxu0
      %vm679 = vcmp.eq.s32.totalorder %v351, 15
      %vm680 = vcmp.eq.s32.totalorder %v352, 15
      %v681 = vrot.slane %v673, 1
      %v682 = vrot.slane %v676, 1
      %vm683 = vcmp.lt.s32.totalorder %v351, 7
      %v684 = vsel %vm683, %v681, %v682
      %v685 = vsel %vm683, %v682, %v681
      %v686 = vsel %vm679, 0.0, %v684
      %v687 = vsel %vm680, 0.0, %v685
      %v688 = vadd.f32 %v567, %v686
      %v689 = vadd.f32 %v570, %v687
      %v690 = vld [vmem:[%s5] sm:$0x1]
      %v692 = vlaneseq
      %v693 = vshrl.u32 %v692, 7
      %v694 = vsub.s32 0, %v693
      %v695 = vrot.slane %v690, %v694
      %v697 = vadd.f32 %v688, %v695
      %v698 = vadd.f32 %v689, %v695
      %v699 = vtanh.pop %v697
      %v700 = vtanh.pop %v698
      %v701 = vld [vmem:[%s320] sm:$0xff]
      %v702 = vld [vmem:[%s320 + $0x8] sm:$0xff]
      %v703 = vld [vmem:[%s6] sm:$0xff]
      %v704 = vld [vmem:[%s6 + $0x8] sm:$0xff]
      %v705 = vld [vmem:[%s6 + $0x10] sm:$0xff]
      %v706 = vld [vmem:[%s6 + $0x18] sm:$0xff]
      %v707 = vld [vmem:[%s6 + $0x20] sm:$0xff]
      %v708 = vld [vmem:[%s6 + $0x28] sm:$0xff]
      %v709 = vld [vmem:[%s6 + $0x30] sm:$0xff]
      %v710 = vld [vmem:[%s6 + $0x38] sm:$0xff]
      %v711 = vld [vmem:[%s7] sm:$0x1]
      %v713 = vlaneseq
      %v714 = vshrl.u32 %v713, 7
      %v715 = vsub.s32 0, %v714
      %v716 = vrot.slane %v711, %v715
      %vm718 = vcmask 523264
      %v720 = vsel %vm718, %v701, 0
      %v723 = vsel %vm718, %v702, 0
      %725 = vmatprep.subr.mxu0 0.0
      %726 = vmatpush1.msra.mxu0 %v703
      %727 = vmatprep.subr.mxu0 0.0
      %728 = vmatpush1.msra.mxu0 %v704
      %729 = vmatprep.subr.mxu0 0.0
      %730 = vmatpush1.msra.mxu0 %v705
      %731 = vmatprep.subr.mxu0 0.0
      %732 = vmatpush1.msra.mxu0 %v706
      %733 = vmatprep.subr.mxu0 0.0
      %734 = vmatpush1.msra.mxu0 %v707
      %735 = vmatprep.subr.mxu0 0.0
      %736 = vmatpush1.msra.mxu0 %v708
      %737 = vmatprep.subr.mxu0 0.0
      %738 = vmatpush1.msra.mxu0 %v709
      %739 = vmatprep.subr.mxu0 0.0
      %740 = vmatpush1.msra.mxu0 %v710
      %741 = vmatprep.subr.mxu0 0.0
      %742 = vmatpush1.msra.mxu0 0.0
      %743 = vmatprep.subr.mxu0 0.0
      %744 = vmatpush1.msra.mxu0 0.0
      %745 = vmatprep.subr.mxu0 0.0
      %746 = vmatpush1.msra.mxu0 0.0
      %747 = vmatprep.subr.mxu0 0.0
      %748 = vmatpush1.msra.mxu0 0.0
      %749 = vmatprep.subr.mxu0 0.0
      %750 = vmatpush1.msra.mxu0 0.0
      %751 = vmatprep.subr.mxu0 0.0
      %752 = vmatpush1.msra.mxu0 0.0
      %753 = vmatprep.subr.mxu0 0.0
      %754 = vmatpush1.msra.mxu0 0.0
      %755 = vmatprep.subr.mxu0 0.0
      %756 = vmatpush1.msra.mxu0 0.0
      %757 = vmatprep.subr.mxu0 0.0
      %758 = vmatpush1.msra.mxu0 0.0
      %759 = vmatprep.subr.mxu0 0.0
      %760 = vmatpush1.msra.mxu0 0.0
      %761 = vmatprep.subr.mxu0 0.0
      %762 = vmatpush1.msra.mxu0 0.0
      %763 = vmatprep.subr.mxu0 0.0
      %764 = vmatpush1.msra.mxu0 0.0
      %765 = vmatprep.subr.mxu0 0.0
      %766 = vmatpush1.msra.mxu0 0.0
      %767 = vmatprep.subr.mxu0 0.0
      %768 = vmatpush1.msra.mxu0 0.0
      %769 = vmatprep.subr.mxu0 0.0
      %770 = vmatpush1.msra.mxu0 0.0
      %771 = vmatprep.subr.mxu0 0.0
      %772 = vmatpush1.msra.mxu0 0.0
      %773 = vmatprep.subr.mxu0 0.0
      %774 = vmatpush1.msra.mxu0 0.0
      %775 = vmatprep.subr.mxu0 0.0
      %776 = vmatpush1.msra.mxu0 0.0
      %777 = vmatprep.subr.mxu0 0.0
      %778 = vmatpush1.msra.mxu0 0.0
      %779 = vmatprep.subr.mxu0 0.0
      %780 = vmatpush1.msra.mxu0 0.0
      %781 = vmatprep.subr.mxu0 0.0
      %782 = vmatpush1.msra.mxu0 0.0
      %783 = vmatprep.subr.mxu0 0.0
      %784 = vmatpush1.msra.mxu0 0.0
      %785 = vmatprep.subr.mxu0 0.0
      %786 = vmatpush1.msra.mxu0 0.0
      %787 = vmatprep.subr.mxu0 0.0
      %788 = vmatpush1.msra.mxu0 0.0
      %789 = vmatprep.mubr.f32.mxu0 0.0
      %790 = vmatmul.mubr.f32.gmra.mrb[0].mxu0 %v720
      %v791 = vpop.f32.mrb[0].mxu0
      %v792 = vadd.f32 %v716, %v791
      %v793 = vpop.f32.mrb[0].mxu0
      %794 = vmatprep.mubr.f32.mxu0 0.0
      %795 = vmatmul.mubr.f32.gmra.mrb[0].mxu0 %v723
      %v796 = vpop.f32.mrb[0].mxu0
      %v797 = vadd.f32 %v716, %v796
      %v798 = vpop.f32.mrb[0].mxu0
      %799 = vdwg.mxu0
      %v800 = vadd.f32 %v699, %v792
      %v801 = vadd.f32 %v700, %v797
      %802 = vst [vmem:[%s325] sm:$0xff] %v800
      %803 = vst [vmem:[%s325 + $0x8] sm:$0xff] %v801
      %p804 = scmp.lt.s32.totalorder %s19, 1
      %s805 = scalar_select %p804, %s19, 1
      %s806 = smul.addr %s805, 2
      %s807 = smul.addr %s806, 8
      %s808 = scalar_lea.vmem %s8, %s807
      // Predicated region
      $region53: #{residual_layer_pallas.3} parent=51 // pred_check
        %p809 = pneg %p215
      $region54: #{residual_layer_pallas.3} parent=51 // pred_check_branch
        %811 = sbr.rel (%p809) target = $region56
      $region55: #{residual_layer_pallas.3} parent=51 // pred_region
        _
      $region56: #{residual_layer_pallas.3} parent=51 // pred_fallthru
        _
    $region52: #{residual_layer_pallas.3} parent=5 // pred_fallthru
      _
    %p812 = scmp.le.s32.totalorder 2, %s14
    // Predicated region
    $region57: #{residual_layer_pallas.3} parent=5 // pred_check
      %p813 = pneg %p812
    $region58: #{residual_layer_pallas.3} parent=5 // pred_check_branch
      %815 = sbr.rel (%p813) target = $region60
    $region59: #{residual_layer_pallas.3} parent=5 // pred_region
      %s816 = ssub.s32 %s14, 2
      // Predicated region
      $region61: #{residual_layer_pallas.3} parent=59 // pred_check
        %p817 = pneg %p221
      $region62: #{residual_layer_pallas.3} parent=59 // pred_check_branch
        %819 = sbr.rel (%p817) target = $region64
      $region63: #{residual_layer_pallas.3} parent=59 // pred_region
        %p820 = scmp.lt.s32.totalorder %s20, 1
        %s821 = scalar_select %p820, %s20, 1
        %s822 = smul.addr %s821, 2
        %s823 = smul.addr %s822, 8
        %s824 = scalar_lea.vmem %s8, %s823
      $region64: #{residual_layer_pallas.3} parent=59 // pred_fallthru
        _
    $region60: #{residual_layer_pallas.3} parent=5 // pred_fallthru
      _
  $region6: #{residual_layer_pallas.3} parent=0 // loop_footer
    %s18 = sadd.s32 1, %s14
  $region7: #{residual_layer_pallas.3} parent=0 // loop_footer_branch
    %13 = sbr.rel target = $region3
  $region8: #{residual_layer_pallas.3} parent=0 // loop_exit
    _

</llo_original>
